<compile_context>
chip_gen: v7x
topology: tpu7x:2x2x1
jax: 0.10.0
libtpu: 0.0.40
codegen_flags: <defaults>
</compile_context>

<pallas_src>
import functools

import jax
import jax.numpy as jnp
from jax.experimental import pallas as pl
from jax.experimental.pallas import tpu as pltpu


# ----------------------------- Pallas kernel -------------------------------

def lstm_ae_kernel(x_ref, wih_e_ref, whh_e_ref, b_e_ref,
                   wih_d_ref, whh_d_ref, b_d_ref,
                   w_dense_ref, b_dense_ref,
                   out_ref, *, B, T):
    """Encoder -> repeat -> decoder -> dense, all in one kernel.

    Gate columns of all LSTM weights/biases are pre-permuted to (i, f, o, g).

    x_ref:       (T*B, D)   time-major flattened input
    wih_e_ref:   (D, 4*He)  encoder input->hidden (pre-transposed)
    whh_e_ref:   (He, 4*He) encoder hidden->hidden
    b_e_ref:     (1, 4*He)  encoder combined bias (b_ih + b_hh)
    wih_d_ref:   (He, 4*Hd) decoder input->hidden
    whh_d_ref:   (Hd, 4*Hd) decoder hidden->hidden
    b_d_ref:     (1, 4*Hd)  decoder combined bias
    w_dense_ref: (Hd, D)    output projection (pre-transposed)
    b_dense_ref: (1, D)     output projection bias
    out_ref:     (B, T*D)   lane-dense batch-first output
    """
    D = x_ref.shape[1]
    He = whh_e_ref.shape[0]
    Hd = whh_d_ref.shape[0]

    def gates_to_hc(gates, c, H):
        # Gate order (i, f, o, g): one sigmoid push over 3H cols + one tanh.
        sg = jax.nn.sigmoid(gates[:, :3 * H])
        g = jnp.tanh(gates[:, 3 * H:])
        i_g = sg[:, 0 * H:1 * H]
        f_g = sg[:, 1 * H:2 * H]
        o_g = sg[:, 2 * H:3 * H]
        c_new = f_g * c + i_g * g
        h_new = o_g * jnp.tanh(c_new)
        return h_new, c_new

    # ---- encoder: input projection for ALL timesteps as one matmul,
    #      time-major so per-step reads are contiguous sublane blocks --------
    xw_all = (jnp.dot(x_ref[...], wih_e_ref[...],
                      preferred_element_type=jnp.float32)
              + b_e_ref[...])                        # (T*B, 4He)

    whh_e = whh_e_ref[...]
    h = jnp.zeros((B, He), jnp.float32)
    c = jnp.zeros((B, He), jnp.float32)
    for t in range(T):                               # static, fully unrolled
        gates = xw_all[t * B:(t + 1) * B, :] + jnp.dot(
            h, whh_e, preferred_element_type=jnp.float32)
        h, c = gates_to_hc(gates, c, He)
    h_enc = h                                        # (B, He)

    # ---- decoder: input projection is loop-invariant -> hoisted ------------
    dec_in = (jnp.dot(h_enc, wih_d_ref[...],
                      preferred_element_type=jnp.float32)
              + b_d_ref[...])                        # (B, 4Hd), computed once

    whh_d = whh_d_ref[...]
    w_dense = w_dense_ref[...]
    b_dense = b_dense_ref[...]

    hd = jnp.zeros((B, Hd), jnp.float32)
    cd = jnp.zeros((B, Hd), jnp.float32)
    for t in range(T):                               # static, fully unrolled
        gates = dec_in + jnp.dot(hd, whh_d,
                                 preferred_element_type=jnp.float32)
        hd, cd = gates_to_hc(gates, cd, Hd)
        # Per-step dense + static column store: neither feeds the next step,
        # so the MXU push and the vst sit off the recurrence critical path and
        # the final HBM writeback of out_ref is one lane-dense (B, T*D) slab.
        y_t = jnp.dot(hd, w_dense,
                      preferred_element_type=jnp.float32) + b_dense
        out_ref[:, t * D:(t + 1) * D] = y_t
    # TODO(synk): for large T/H replace the unrolled loops with
    # lax.fori_loop(..., unroll=k) carrying (h, c) and a VMEM scratch for the
    # hidden states to bound vreg live ranges.


# ----------------------------- wrapper --------------------------------------

def lstm_ae_forward(x, kparams):
    """x: (B, T, D) batch-first (PyTorch convention). Returns (B, T, D)."""
    B, T, D = x.shape
    # Time-major flatten so per-step encoder reads inside the kernel are
    # contiguous; wrapper-side layout plumbing is cheap.
    x_tm = jnp.transpose(x, (1, 0, 2)).reshape(T * B, D)

    # TODO(synk): once batch >= ~16 rows per core, add a batch grid axis with
    # dimension_semantics=("parallel",) so v7x's two TensorCores split the
    # batch; at B=2 the per-grid-step overhead would dominate.
    out_flat = pl.pallas_call(
        functools.partial(lstm_ae_kernel, B=B, T=T),
        out_shape=jax.ShapeDtypeStruct((B, T * D), jnp.float32),
        in_specs=[pl.BlockSpec(memory_space=pltpu.MemorySpace.VMEM)] * 9,
        out_specs=pl.BlockSpec(memory_space=pltpu.MemorySpace.VMEM),
    )(x_tm,
      kparams["wih_e"], kparams["whh_e"], kparams["b_e"],
      kparams["wih_d"], kparams["whh_d"], kparams["b_d"],
      kparams["w_dense"], kparams["b_dense"])
    return out_flat.reshape(B, T, D)


# ----------------------------- parameter init -------------------------------

def xavier_uniform(key, shape, gain):
    # PyTorch weight shape (out, in): fan_in = shape[1], fan_out = shape[0].
    fan_out, fan_in = shape
    bound = gain * jnp.sqrt(6.0 / (fan_in + fan_out))
    return jax.random.uniform(key, shape, jnp.float32, -bound, bound)


def init_torch_params(key, input_dim, units_enc, units_dec):
    """PyTorch-shaped parameters (gate order i, f, g, o), mirroring LSTM_AE."""
    ks = jax.random.split(key, 10)
    # The module passes gain=sqrt(6/(in+out_units)) to xavier_uniform_, which
    # itself multiplies by sqrt(6/(fan_in+fan_out)); replicated as-is.
    gain_e = jnp.sqrt(6.0 / (input_dim + units_enc))
    gain_d = jnp.sqrt(6.0 / (units_enc + units_dec))

    wih_e = xavier_uniform(ks[0], (4 * units_enc, input_dim), gain_e)
    whh_e = xavier_uniform(ks[1], (4 * units_enc, units_enc), gain_e)
    be = 1.0 / jnp.sqrt(units_enc)
    bih_e = jax.random.uniform(ks[2], (4 * units_enc,), jnp.float32, -be, be)
    bhh_e = jax.random.uniform(ks[3], (4 * units_enc,), jnp.float32, -be, be)

    wih_d = xavier_uniform(ks[4], (4 * units_dec, units_enc), gain_d)
    whh_d = xavier_uniform(ks[5], (4 * units_dec, units_dec), gain_d)
    bd = 1.0 / jnp.sqrt(units_dec)
    bih_d = jax.random.uniform(ks[6], (4 * units_dec,), jnp.float32, -bd, bd)
    bhh_d = jax.random.uniform(ks[7], (4 * units_dec,), jnp.float32, -bd, bd)

    # Dense: Linear(units_dec, input_dim).
    bl = 1.0 / jnp.sqrt(units_dec)
    w_dense = jax.random.uniform(ks[8], (input_dim, units_dec),
                                 jnp.float32, -bl, bl)
    b_dense = jax.random.uniform(ks[9], (input_dim,), jnp.float32, -bl, bl)

    return dict(wih_e=wih_e, whh_e=whh_e, bih_e=bih_e, bhh_e=bhh_e,
                wih_d=wih_d, whh_d=whh_d, bih_d=bih_d, bhh_d=bhh_d,
                w_dense=w_dense, b_dense=b_dense)


def prepare_kernel_params(tp, units_enc, units_dec):
    """Permute gate columns (i,f,g,o)->(i,f,o,g), transpose, combine biases."""
    def reorder(a, H):
        # leading axis is 4H in PyTorch order (i, f, g, o) -> (i, f, o, g)
        return jnp.concatenate(
            [a[0 * H:1 * H], a[1 * H:2 * H], a[3 * H:4 * H], a[2 * H:3 * H]],
            axis=0)

    He, Hd = units_enc, units_dec
    return {
        "wih_e": reorder(tp["wih_e"], He).T,                     # (D, 4He)
        "whh_e": reorder(tp["whh_e"], He).T,                     # (He, 4He)
        "b_e": reorder(tp["bih_e"] + tp["bhh_e"], He)[None, :],  # (1, 4He)
        "wih_d": reorder(tp["wih_d"], Hd).T,                     # (He, 4Hd)
        "whh_d": reorder(tp["whh_d"], Hd).T,                     # (Hd, 4Hd)
        "b_d": reorder(tp["bih_d"] + tp["bhh_d"], Hd)[None, :],  # (1, 4Hd)
        "w_dense": tp["w_dense"].T,                              # (Hd, D)
        "b_dense": tp["b_dense"][None, :],                       # (1, D)
    }


# ----------------------------- pure-JAX reference ---------------------------

def lstm_ae_reference(x, tp):
    """Pure-JAX reference in PyTorch conventions (gate order i, f, g, o)."""
    B, T, D = x.shape
    He = tp["whh_e"].shape[1]
    Hd = tp["whh_d"].shape[1]

    def lstm_step(h, c, x_t, w_ih, w_hh, b_ih, b_hh, H):
        gates = x_t @ w_ih.T + h @ w_hh.T + b_ih + b_hh
        i = jax.nn.sigmoid(gates[:, 0 * H:1 * H])
        f = jax.nn.sigmoid(gates[:, 1 * H:2 * H])
        g = jnp.tanh(gates[:, 2 * H:3 * H])
        o = jax.nn.sigmoid(gates[:, 3 * H:4 * H])
        c = f * c + i * g
        h = o * jnp.tanh(c)
        return h, c

    h = jnp.zeros((B, He), jnp.float32)
    c = jnp.zeros((B, He), jnp.float32)
    for t in range(T):
        h, c = lstm_step(h, c, x[:, t, :], tp["wih_e"], tp["whh_e"],
                         tp["bih_e"], tp["bhh_e"], He)
    h_enc = h

    hd = jnp.zeros((B, Hd), jnp.float32)
    cd = jnp.zeros((B, Hd), jnp.float32)
    outs = []
    for t in range(T):
        hd, cd = lstm_step(hd, cd, h_enc, tp["wih_d"], tp["whh_d"],
                           tp["bih_d"], tp["bhh_d"], Hd)
        outs.append(hd @ tp["w_dense"].T + tp["b_dense"])
    return jnp.stack(outs, axis=1)  # (B, T, D)


# ----------------------------- main ------------------------------------------

if __name__ == "__main__":
    batch = 2
    timesteps = 8
    input_dim = 16
    units_enc = 32
    units_dec = 32

    key = jax.random.PRNGKey(0)
    k_x, k_p = jax.random.split(key)
    x = jax.random.normal(k_x, (batch, timesteps, input_dim), jnp.float32)

    torch_params = init_torch_params(k_p, input_dim, units_enc, units_dec)
    kparams = prepare_kernel_params(torch_params, units_enc, units_dec)

    out = lstm_ae_forward(x, kparams)
    out = jax.block_until_ready(out)

    ref = lstm_ae_reference(x, torch_params)
    assert out.shape == (batch, timesteps, input_dim)
    assert jnp.allclose(out, ref, atol=1e-5, rtol=1e-5), "mismatch vs reference"

    print("KERNEL_OK")
</pallas_src>

<mosaic_0001>
module attributes {stable_mosaic.version = 11 : i64} {
  func.func @lstm_ae_kernel(%arg0: memref<16x16xf32, #tpu.memory_space<vmem>>, %arg1: memref<16x128xf32, #tpu.memory_space<vmem>>, %arg2: memref<32x128xf32, #tpu.memory_space<vmem>>, %arg3: memref<1x128xf32, #tpu.memory_space<vmem>>, %arg4: memref<32x128xf32, #tpu.memory_space<vmem>>, %arg5: memref<32x128xf32, #tpu.memory_space<vmem>>, %arg6: memref<1x128xf32, #tpu.memory_space<vmem>>, %arg7: memref<32x16xf32, #tpu.memory_space<vmem>>, %arg8: memref<1x16xf32, #tpu.memory_space<vmem>>, %arg9: memref<2x128xf32, #tpu.memory_space<vmem>>) attributes {dimension_semantics = [], scalar_prefetch = 0 : i64, scratch_operands = 0 : i64, tpu.core_type = #tpu.core_type<tc>} {
    %c0 = arith.constant 0 : index
    %c0_0 = arith.constant 0 : index
    %0 = vector.load %arg0[%c0, %c0_0] : memref<16x16xf32, #tpu.memory_space<vmem>>, vector<16x16xf32>
    %c0_1 = arith.constant 0 : index
    %c0_2 = arith.constant 0 : index
    %1 = vector.load %arg1[%c0_1, %c0_2] : memref<16x128xf32, #tpu.memory_space<vmem>>, vector<16x128xf32>
    %cst = arith.constant dense<0.000000e+00> : vector<16x128xf32>
    %2 = tpu.matmul %0, %1, %cst {dimension_numbers = #tpu.dot_dimension_numbers<[1], [0], [0], [1], [0, 0, 1, 1], [], []>} : vector<16x16xf32>, vector<16x128xf32>, vector<16x128xf32> -> vector<16x128xf32>
    %c0_3 = arith.constant 0 : index
    %c0_4 = arith.constant 0 : index
    %3 = vector.load %arg3[%c0_3, %c0_4] : memref<1x128xf32, #tpu.memory_space<vmem>>, vector<1x128xf32>
    %4 = vector.broadcast %3 : vector<1x128xf32> to vector<16x128xf32>
    %5 = arith.addf %2, %4 : vector<16x128xf32>
    %c0_5 = arith.constant 0 : index
    %c0_6 = arith.constant 0 : index
    %6 = vector.load %arg2[%c0_5, %c0_6] : memref<32x128xf32, #tpu.memory_space<vmem>>, vector<32x128xf32>
    %cst_7 = arith.constant 0.000000e+00 : f32
    %7 = vector.broadcast %cst_7 : f32 to vector<2x32xf32>
    %cst_8 = arith.constant 0.000000e+00 : f32
    %8 = vector.broadcast %cst_8 : f32 to vector<2x32xf32>
    %9 = vector.extract_strided_slice %5 {offsets = [0, 0], sizes = [2, 128], strides = [1, 1]} : vector<16x128xf32> to vector<2x128xf32>
    %cst_9 = arith.constant dense<0.000000e+00> : vector<2x128xf32>
    %10 = tpu.matmul %7, %6, %cst_9 {dimension_numbers = #tpu.dot_dimension_numbers<[1], [0], [0], [1], [0, 0, 1, 1], [], []>} : vector<2x32xf32>, vector<32x128xf32>, vector<2x128xf32> -> vector<2x128xf32>
    %11 = arith.addf %9, %10 : vector<2x128xf32>
    %12 = vector.extract_strided_slice %11 {offsets = [0, 0], sizes = [2, 96], strides = [1, 1]} : vector<2x128xf32> to vector<2x96xf32>
    %13 = arith.negf %12 : vector<2x96xf32>
    %14 = math.exp %13 : vector<2x96xf32>
    %cst_10 = arith.constant 1.000000e+00 : f32
    %15 = vector.broadcast %cst_10 : f32 to vector<2x96xf32>
    %16 = arith.addf %15, %14 : vector<2x96xf32>
    %17 = arith.divf %15, %16 : vector<2x96xf32>
    %18 = vector.extract_strided_slice %11 {offsets = [0, 96], sizes = [2, 32], strides = [1, 1]} : vector<2x128xf32> to vector<2x32xf32>
    %19 = math.tanh %18 : vector<2x32xf32>
    %20 = vector.extract_strided_slice %17 {offsets = [0, 0], sizes = [2, 32], strides = [1, 1]} : vector<2x96xf32> to vector<2x32xf32>
    %21 = vector.extract_strided_slice %17 {offsets = [0, 32], sizes = [2, 32], strides = [1, 1]} : vector<2x96xf32> to vector<2x32xf32>
    %22 = vector.extract_strided_slice %17 {offsets = [0, 64], sizes = [2, 32], strides = [1, 1]} : vector<2x96xf32> to vector<2x32xf32>
    %23 = arith.mulf %21, %8 : vector<2x32xf32>
    %24 = arith.mulf %20, %19 : vector<2x32xf32>
    %25 = arith.addf %23, %24 : vector<2x32xf32>
    %26 = math.tanh %25 : vector<2x32xf32>
    %27 = arith.mulf %22, %26 : vector<2x32xf32>
    %28 = vector.extract_strided_slice %5 {offsets = [2, 0], sizes = [2, 128], strides = [1, 1]} : vector<16x128xf32> to vector<2x128xf32>
    %cst_11 = arith.constant dense<0.000000e+00> : vector<2x128xf32>
    %29 = tpu.matmul %27, %6, %cst_11 {dimension_numbers = #tpu.dot_dimension_numbers<[1], [0], [0], [1], [0, 0, 1, 1], [], []>} : vector<2x32xf32>, vector<32x128xf32>, vector<2x128xf32> -> vector<2x128xf32>
    %30 = arith.addf %28, %29 : vector<2x128xf32>
    %31 = vector.extract_strided_slice %30 {offsets = [0, 0], sizes = [2, 96], strides = [1, 1]} : vector<2x128xf32> to vector<2x96xf32>
    %32 = arith.negf %31 : vector<2x96xf32>
    %33 = math.exp %32 : vector<2x96xf32>
    %cst_12 = arith.constant 1.000000e+00 : f32
    %34 = vector.broadcast %cst_12 : f32 to vector<2x96xf32>
    %35 = arith.addf %34, %33 : vector<2x96xf32>
    %36 = arith.divf %34, %35 : vector<2x96xf32>
    %37 = vector.extract_strided_slice %30 {offsets = [0, 96], sizes = [2, 32], strides = [1, 1]} : vector<2x128xf32> to vector<2x32xf32>
    %38 = math.tanh %37 : vector<2x32xf32>
    %39 = vector.extract_strided_slice %36 {offsets = [0, 0], sizes = [2, 32], strides = [1, 1]} : vector<2x96xf32> to vector<2x32xf32>
    %40 = vector.extract_strided_slice %36 {offsets = [0, 32], sizes = [2, 32], strides = [1, 1]} : vector<2x96xf32> to vector<2x32xf32>
    %41 = vector.extract_strided_slice %36 {offsets = [0, 64], sizes = [2, 32], strides = [1, 1]} : vector<2x96xf32> to vector<2x32xf32>
    %42 = arith.mulf %40, %25 : vector<2x32xf32>
    %43 = arith.mulf %39, %38 : vector<2x32xf32>
    %44 = arith.addf %42, %43 : vector<2x32xf32>
    %45 = math.tanh %44 : vector<2x32xf32>
    %46 = arith.mulf %41, %45 : vector<2x32xf32>
    %47 = vector.extract_strided_slice %5 {offsets = [4, 0], sizes = [2, 128], strides = [1, 1]} : vector<16x128xf32> to vector<2x128xf32>
    %cst_13 = arith.constant dense<0.000000e+00> : vector<2x128xf32>
    %48 = tpu.matmul %46, %6, %cst_13 {dimension_numbers = #tpu.dot_dimension_numbers<[1], [0], [0], [1], [0, 0, 1, 1], [], []>} : vector<2x32xf32>, vector<32x128xf32>, vector<2x128xf32> -> vector<2x128xf32>
    %49 = arith.addf %47, %48 : vector<2x128xf32>
    %50 = vector.extract_strided_slice %49 {offsets = [0, 0], sizes = [2, 96], strides = [1, 1]} : vector<2x128xf32> to vector<2x96xf32>
    %51 = arith.negf %50 : vector<2x96xf32>
    %52 = math.exp %51 : vector<2x96xf32>
    %cst_14 = arith.constant 1.000000e+00 : f32
    %53 = vector.broadcast %cst_14 : f32 to vector<2x96xf32>
    %54 = arith.addf %53, %52 : vector<2x96xf32>
    %55 = arith.divf %53, %54 : vector<2x96xf32>
    %56 = vector.extract_strided_slice %49 {offsets = [0, 96], sizes = [2, 32], strides = [1, 1]} : vector<2x128xf32> to vector<2x32xf32>
    %57 = math.tanh %56 : vector<2x32xf32>
    %58 = vector.extract_strided_slice %55 {offsets = [0, 0], sizes = [2, 32], strides = [1, 1]} : vector<2x96xf32> to vector<2x32xf32>
    %59 = vector.extract_strided_slice %55 {offsets = [0, 32], sizes = [2, 32], strides = [1, 1]} : vector<2x96xf32> to vector<2x32xf32>
    %60 = vector.extract_strided_slice %55 {offsets = [0, 64], sizes = [2, 32], strides = [1, 1]} : vector<2x96xf32> to vector<2x32xf32>
    %61 = arith.mulf %59, %44 : vector<2x32xf32>
    %62 = arith.mulf %58, %57 : vector<2x32xf32>
    %63 = arith.addf %61, %62 : vector<2x32xf32>
    %64 = math.tanh %63 : vector<2x32xf32>
    %65 = arith.mulf %60, %64 : vector<2x32xf32>
    %66 = vector.extract_strided_slice %5 {offsets = [6, 0], sizes = [2, 128], strides = [1, 1]} : vector<16x128xf32> to vector<2x128xf32>
    %cst_15 = arith.constant dense<0.000000e+00> : vector<2x128xf32>
    %67 = tpu.matmul %65, %6, %cst_15 {dimension_numbers = #tpu.dot_dimension_numbers<[1], [0], [0], [1], [0, 0, 1, 1], [], []>} : vector<2x32xf32>, vector<32x128xf32>, vector<2x128xf32> -> vector<2x128xf32>
    %68 = arith.addf %66, %67 : vector<2x128xf32>
    %69 = vector.extract_strided_slice %68 {offsets = [0, 0], sizes = [2, 96], strides = [1, 1]} : vector<2x128xf32> to vector<2x96xf32>
    %70 = arith.negf %69 : vector<2x96xf32>
    %71 = math.exp %70 : vector<2x96xf32>
    %cst_16 = arith.constant 1.000000e+00 : f32
    %72 = vector.broadcast %cst_16 : f32 to vector<2x96xf32>
    %73 = arith.addf %72, %71 : vector<2x96xf32>
    %74 = arith.divf %72, %73 : vector<2x96xf32>
    %75 = vector.extract_strided_slice %68 {offsets = [0, 96], sizes = [2, 32], strides = [1, 1]} : vector<2x128xf32> to vector<2x32xf32>
    %76 = math.tanh %75 : vector<2x32xf32>
    %77 = vector.extract_strided_slice %74 {offsets = [0, 0], sizes = [2, 32], strides = [1, 1]} : vector<2x96xf32> to vector<2x32xf32>
    %78 = vector.extract_strided_slice %74 {offsets = [0, 32], sizes = [2, 32], strides = [1, 1]} : vector<2x96xf32> to vector<2x32xf32>
    %79 = vector.extract_strided_slice %74 {offsets = [0, 64], sizes = [2, 32], strides = [1, 1]} : vector<2x96xf32> to vector<2x32xf32>
    %80 = arith.mulf %78, %63 : vector<2x32xf32>
    %81 = arith.mulf %77, %76 : vector<2x32xf32>
    %82 = arith.addf %80, %81 : vector<2x32xf32>
    %83 = math.tanh %82 : vector<2x32xf32>
    %84 = arith.mulf %79, %83 : vector<2x32xf32>
    %85 = vector.extract_strided_slice %5 {offsets = [8, 0], sizes = [2, 128], strides = [1, 1]} : vector<16x128xf32> to vector<2x128xf32>
    %cst_17 = arith.constant dense<0.000000e+00> : vector<2x128xf32>
    %86 = tpu.matmul %84, %6, %cst_17 {dimension_numbers = #tpu.dot_dimension_numbers<[1], [0], [0], [1], [0, 0, 1, 1], [], []>} : vector<2x32xf32>, vector<32x128xf32>, vector<2x128xf32> -> vector<2x128xf32>
    %87 = arith.addf %85, %86 : vector<2x128xf32>
    %88 = vector.extract_strided_slice %87 {offsets = [0, 0], sizes = [2, 96], strides = [1, 1]} : vector<2x128xf32> to vector<2x96xf32>
    %89 = arith.negf %88 : vector<2x96xf32>
    %90 = math.exp %89 : vector<2x96xf32>
    %cst_18 = arith.constant 1.000000e+00 : f32
    %91 = vector.broadcast %cst_18 : f32 to vector<2x96xf32>
    %92 = arith.addf %91, %90 : vector<2x96xf32>
    %93 = arith.divf %91, %92 : vector<2x96xf32>
    %94 = vector.extract_strided_slice %87 {offsets = [0, 96], sizes = [2, 32], strides = [1, 1]} : vector<2x128xf32> to vector<2x32xf32>
    %95 = math.tanh %94 : vector<2x32xf32>
    %96 = vector.extract_strided_slice %93 {offsets = [0, 0], sizes = [2, 32], strides = [1, 1]} : vector<2x96xf32> to vector<2x32xf32>
    %97 = vector.extract_strided_slice %93 {offsets = [0, 32], sizes = [2, 32], strides = [1, 1]} : vector<2x96xf32> to vector<2x32xf32>
    %98 = vector.extract_strided_slice %93 {offsets = [0, 64], sizes = [2, 32], strides = [1, 1]} : vector<2x96xf32> to vector<2x32xf32>
    %99 = arith.mulf %97, %82 : vector<2x32xf32>
    %100 = arith.mulf %96, %95 : vector<2x32xf32>
    %101 = arith.addf %99, %100 : vector<2x32xf32>
    %102 = math.tanh %101 : vector<2x32xf32>
    %103 = arith.mulf %98, %102 : vector<2x32xf32>
    %104 = vector.extract_strided_slice %5 {offsets = [10, 0], sizes = [2, 128], strides = [1, 1]} : vector<16x128xf32> to vector<2x128xf32>
    %cst_19 = arith.constant dense<0.000000e+00> : vector<2x128xf32>
    %105 = tpu.matmul %103, %6, %cst_19 {dimension_numbers = #tpu.dot_dimension_numbers<[1], [0], [0], [1], [0, 0, 1, 1], [], []>} : vector<2x32xf32>, vector<32x128xf32>, vector<2x128xf32> -> vector<2x128xf32>
    %106 = arith.addf %104, %105 : vector<2x128xf32>
    %107 = vector.extract_strided_slice %106 {offsets = [0, 0], sizes = [2, 96], strides = [1, 1]} : vector<2x128xf32> to vector<2x96xf32>
    %108 = arith.negf %107 : vector<2x96xf32>
    %109 = math.exp %108 : vector<2x96xf32>
    %cst_20 = arith.constant 1.000000e+00 : f32
    %110 = vector.broadcast %cst_20 : f32 to vector<2x96xf32>
    %111 = arith.addf %110, %109 : vector<2x96xf32>
    %112 = arith.divf %110, %111 : vector<2x96xf32>
    %113 = vector.extract_strided_slice %106 {offsets = [0, 96], sizes = [2, 32], strides = [1, 1]} : vector<2x128xf32> to vector<2x32xf32>
    %114 = math.tanh %113 : vector<2x32xf32>
    %115 = vector.extract_strided_slice %112 {offsets = [0, 0], sizes = [2, 32], strides = [1, 1]} : vector<2x96xf32> to vector<2x32xf32>
    %116 = vector.extract_strided_slice %112 {offsets = [0, 32], sizes = [2, 32], strides = [1, 1]} : vector<2x96xf32> to vector<2x32xf32>
    %117 = vector.extract_strided_slice %112 {offsets = [0, 64], sizes = [2, 32], strides = [1, 1]} : vector<2x96xf32> to vector<2x32xf32>
    %118 = arith.mulf %116, %101 : vector<2x32xf32>
    %119 = arith.mulf %115, %114 : vector<2x32xf32>
    %120 = arith.addf %118, %119 : vector<2x32xf32>
    %121 = math.tanh %120 : vector<2x32xf32>
    %122 = arith.mulf %117, %121 : vector<2x32xf32>
    %123 = vector.extract_strided_slice %5 {offsets = [12, 0], sizes = [2, 128], strides = [1, 1]} : vector<16x128xf32> to vector<2x128xf32>
    %cst_21 = arith.constant dense<0.000000e+00> : vector<2x128xf32>
    %124 = tpu.matmul %122, %6, %cst_21 {dimension_numbers = #tpu.dot_dimension_numbers<[1], [0], [0], [1], [0, 0, 1, 1], [], []>} : vector<2x32xf32>, vector<32x128xf32>, vector<2x128xf32> -> vector<2x128xf32>
    %125 = arith.addf %123, %124 : vector<2x128xf32>
    %126 = vector.extract_strided_slice %125 {offsets = [0, 0], sizes = [2, 96], strides = [1, 1]} : vector<2x128xf32> to vector<2x96xf32>
    %127 = arith.negf %126 : vector<2x96xf32>
    %128 = math.exp %127 : vector<2x96xf32>
    %cst_22 = arith.constant 1.000000e+00 : f32
    %129 = vector.broadcast %cst_22 : f32 to vector<2x96xf32>
    %130 = arith.addf %129, %128 : vector<2x96xf32>
    %131 = arith.divf %129, %130 : vector<2x96xf32>
    %132 = vector.extract_strided_slice %125 {offsets = [0, 96], sizes = [2, 32], strides = [1, 1]} : vector<2x128xf32> to vector<2x32xf32>
    %133 = math.tanh %132 : vector<2x32xf32>
    %134 = vector.extract_strided_slice %131 {offsets = [0, 0], sizes = [2, 32], strides = [1, 1]} : vector<2x96xf32> to vector<2x32xf32>
    %135 = vector.extract_strided_slice %131 {offsets = [0, 32], sizes = [2, 32], strides = [1, 1]} : vector<2x96xf32> to vector<2x32xf32>
    %136 = vector.extract_strided_slice %131 {offsets = [0, 64], sizes = [2, 32], strides = [1, 1]} : vector<2x96xf32> to vector<2x32xf32>
    %137 = arith.mulf %135, %120 : vector<2x32xf32>
    %138 = arith.mulf %134, %133 : vector<2x32xf32>
    %139 = arith.addf %137, %138 : vector<2x32xf32>
    %140 = math.tanh %139 : vector<2x32xf32>
    %141 = arith.mulf %136, %140 : vector<2x32xf32>
    %142 = vector.extract_strided_slice %5 {offsets = [14, 0], sizes = [2, 128], strides = [1, 1]} : vector<16x128xf32> to vector<2x128xf32>
    %cst_23 = arith.constant dense<0.000000e+00> : vector<2x128xf32>
    %143 = tpu.matmul %141, %6, %cst_23 {dimension_numbers = #tpu.dot_dimension_numbers<[1], [0], [0], [1], [0, 0, 1, 1], [], []>} : vector<2x32xf32>, vector<32x128xf32>, vector<2x128xf32> -> vector<2x128xf32>
    %144 = arith.addf %142, %143 : vector<2x128xf32>
    %145 = vector.extract_strided_slice %144 {offsets = [0, 0], sizes = [2, 96], strides = [1, 1]} : vector<2x128xf32> to vector<2x96xf32>
    %146 = arith.negf %145 : vector<2x96xf32>
    %147 = math.exp %146 : vector<2x96xf32>
    %cst_24 = arith.constant 1.000000e+00 : f32
    %148 = vector.broadcast %cst_24 : f32 to vector<2x96xf32>
    %149 = arith.addf %148, %147 : vector<2x96xf32>
    %150 = arith.divf %148, %149 : vector<2x96xf32>
    %151 = vector.extract_strided_slice %144 {offsets = [0, 96], sizes = [2, 32], strides = [1, 1]} : vector<2x128xf32> to vector<2x32xf32>
    %152 = math.tanh %151 : vector<2x32xf32>
    %153 = vector.extract_strided_slice %150 {offsets = [0, 0], sizes = [2, 32], strides = [1, 1]} : vector<2x96xf32> to vector<2x32xf32>
    %154 = vector.extract_strided_slice %150 {offsets = [0, 32], sizes = [2, 32], strides = [1, 1]} : vector<2x96xf32> to vector<2x32xf32>
    %155 = vector.extract_strided_slice %150 {offsets = [0, 64], sizes = [2, 32], strides = [1, 1]} : vector<2x96xf32> to vector<2x32xf32>
    %156 = arith.mulf %154, %139 : vector<2x32xf32>
    %157 = arith.mulf %153, %152 : vector<2x32xf32>
    %158 = arith.addf %156, %157 : vector<2x32xf32>
    %159 = math.tanh %158 : vector<2x32xf32>
    %160 = arith.mulf %155, %159 : vector<2x32xf32>
    %c0_25 = arith.constant 0 : index
    %c0_26 = arith.constant 0 : index
    %161 = vector.load %arg4[%c0_25, %c0_26] : memref<32x128xf32, #tpu.memory_space<vmem>>, vector<32x128xf32>
    %cst_27 = arith.constant dense<0.000000e+00> : vector<2x128xf32>
    %162 = tpu.matmul %160, %161, %cst_27 {dimension_numbers = #tpu.dot_dimension_numbers<[1], [0], [0], [1], [0, 0, 1, 1], [], []>} : vector<2x32xf32>, vector<32x128xf32>, vector<2x128xf32> -> vector<2x128xf32>
    %c0_28 = arith.constant 0 : index
    %c0_29 = arith.constant 0 : index
    %163 = vector.load %arg6[%c0_28, %c0_29] : memref<1x128xf32, #tpu.memory_space<vmem>>, vector<1x128xf32>
    %164 = vector.broadcast %163 : vector<1x128xf32> to vector<2x128xf32>
    %165 = arith.addf %162, %164 : vector<2x128xf32>
    %c0_30 = arith.constant 0 : index
    %c0_31 = arith.constant 0 : index
    %166 = vector.load %arg5[%c0_30, %c0_31] : memref<32x128xf32, #tpu.memory_space<vmem>>, vector<32x128xf32>
    %c0_32 = arith.constant 0 : index
    %c0_33 = arith.constant 0 : index
    %167 = vector.load %arg7[%c0_32, %c0_33] : memref<32x16xf32, #tpu.memory_space<vmem>>, vector<32x16xf32>
    %c0_34 = arith.constant 0 : index
    %c0_35 = arith.constant 0 : index
    %168 = vector.load %arg8[%c0_34, %c0_35] : memref<1x16xf32, #tpu.memory_space<vmem>>, vector<1x16xf32>
    %cst_36 = arith.constant 0.000000e+00 : f32
    %169 = vector.broadcast %cst_36 : f32 to vector<2x32xf32>
    %cst_37 = arith.constant 0.000000e+00 : f32
    %170 = vector.broadcast %cst_37 : f32 to vector<2x32xf32>
    %cst_38 = arith.constant dense<0.000000e+00> : vector<2x128xf32>
    %171 = tpu.matmul %169, %166, %cst_38 {dimension_numbers = #tpu.dot_dimension_numbers<[1], [0], [0], [1], [0, 0, 1, 1], [], []>} : vector<2x32xf32>, vector<32x128xf32>, vector<2x128xf32> -> vector<2x128xf32>
    %172 = arith.addf %165, %171 : vector<2x128xf32>
    %173 = vector.extract_strided_slice %172 {offsets = [0, 0], sizes = [2, 96], strides = [1, 1]} : vector<2x128xf32> to vector<2x96xf32>
    %174 = arith.negf %173 : vector<2x96xf32>
    %175 = math.exp %174 : vector<2x96xf32>
    %cst_39 = arith.constant 1.000000e+00 : f32
    %176 = vector.broadcast %cst_39 : f32 to vector<2x96xf32>
    %177 = arith.addf %176, %175 : vector<2x96xf32>
    %178 = arith.divf %176, %177 : vector<2x96xf32>
    %179 = vector.extract_strided_slice %172 {offsets = [0, 96], sizes = [2, 32], strides = [1, 1]} : vector<2x128xf32> to vector<2x32xf32>
    %180 = math.tanh %179 : vector<2x32xf32>
    %181 = vector.extract_strided_slice %178 {offsets = [0, 0], sizes = [2, 32], strides = [1, 1]} : vector<2x96xf32> to vector<2x32xf32>
    %182 = vector.extract_strided_slice %178 {offsets = [0, 32], sizes = [2, 32], strides = [1, 1]} : vector<2x96xf32> to vector<2x32xf32>
    %183 = vector.extract_strided_slice %178 {offsets = [0, 64], sizes = [2, 32], strides = [1, 1]} : vector<2x96xf32> to vector<2x32xf32>
    %184 = arith.mulf %182, %170 : vector<2x32xf32>
    %185 = arith.mulf %181, %180 : vector<2x32xf32>
    %186 = arith.addf %184, %185 : vector<2x32xf32>
    %187 = math.tanh %186 : vector<2x32xf32>
    %188 = arith.mulf %183, %187 : vector<2x32xf32>
    %cst_40 = arith.constant dense<0.000000e+00> : vector<2x16xf32>
    %189 = tpu.matmul %188, %167, %cst_40 {dimension_numbers = #tpu.dot_dimension_numbers<[1], [0], [0], [1], [0, 0, 1, 1], [], []>} : vector<2x32xf32>, vector<32x16xf32>, vector<2x16xf32> -> vector<2x16xf32>
    %190 = vector.broadcast %168 : vector<1x16xf32> to vector<2x16xf32>
    %191 = arith.addf %189, %190 : vector<2x16xf32>
    %c0_41 = arith.constant 0 : index
    %c0_42 = arith.constant 0 : index
    %192 = vector.load %arg9[%c0_41, %c0_42] : memref<2x128xf32, #tpu.memory_space<vmem>>, vector<2x16xf32>
    tpu.vector_store %arg9[%c0_41, %c0_42], %191 {strides = array<i32>} : memref<2x128xf32, #tpu.memory_space<vmem>>, vector<2x16xf32>,
    %cst_43 = arith.constant dense<0.000000e+00> : vector<2x128xf32>
    %193 = tpu.matmul %188, %166, %cst_43 {dimension_numbers = #tpu.dot_dimension_numbers<[1], [0], [0], [1], [0, 0, 1, 1], [], []>} : vector<2x32xf32>, vector<32x128xf32>, vector<2x128xf32> -> vector<2x128xf32>
    %194 = arith.addf %165, %193 : vector<2x128xf32>
    %195 = vector.extract_strided_slice %194 {offsets = [0, 0], sizes = [2, 96], strides = [1, 1]} : vector<2x128xf32> to vector<2x96xf32>
    %196 = arith.negf %195 : vector<2x96xf32>
    %197 = math.exp %196 : vector<2x96xf32>
    %cst_44 = arith.constant 1.000000e+00 : f32
    %198 = vector.broadcast %cst_44 : f32 to vector<2x96xf32>
    %199 = arith.addf %198, %197 : vector<2x96xf32>
    %200 = arith.divf %198, %199 : vector<2x96xf32>
    %201 = vector.extract_strided_slice %194 {offsets = [0, 96], sizes = [2, 32], strides = [1, 1]} : vector<2x128xf32> to vector<2x32xf32>
    %202 = math.tanh %201 : vector<2x32xf32>
    %203 = vector.extract_strided_slice %200 {offsets = [0, 0], sizes = [2, 32], strides = [1, 1]} : vector<2x96xf32> to vector<2x32xf32>
    %204 = vector.extract_strided_slice %200 {offsets = [0, 32], sizes = [2, 32], strides = [1, 1]} : vector<2x96xf32> to vector<2x32xf32>
    %205 = vector.extract_strided_slice %200 {offsets = [0, 64], sizes = [2, 32], strides = [1, 1]} : vector<2x96xf32> to vector<2x32xf32>
    %206 = arith.mulf %204, %186 : vector<2x32xf32>
    %207 = arith.mulf %203, %202 : vector<2x32xf32>
    %208 = arith.addf %206, %207 : vector<2x32xf32>
    %209 = math.tanh %208 : vector<2x32xf32>
    %210 = arith.mulf %205, %209 : vector<2x32xf32>
    %cst_45 = arith.constant dense<0.000000e+00> : vector<2x16xf32>
    %211 = tpu.matmul %210, %167, %cst_45 {dimension_numbers = #tpu.dot_dimension_numbers<[1], [0], [0], [1], [0, 0, 1, 1], [], []>} : vector<2x32xf32>, vector<32x16xf32>, vector<2x16xf32> -> vector<2x16xf32>
    %212 = vector.broadcast %168 : vector<1x16xf32> to vector<2x16xf32>
    %213 = arith.addf %211, %212 : vector<2x16xf32>
    %c0_46 = arith.constant 0 : index
    %c16 = arith.constant 16 : index
    %214 = vector.load %arg9[%c0_46, %c16] : memref<2x128xf32, #tpu.memory_space<vmem>>, vector<2x16xf32>
    tpu.vector_store %arg9[%c0_46, %c16], %213 {strides = array<i32>} : memref<2x128xf32, #tpu.memory_space<vmem>>, vector<2x16xf32>,
    %cst_47 = arith.constant dense<0.000000e+00> : vector<2x128xf32>
    %215 = tpu.matmul %210, %166, %cst_47 {dimension_numbers = #tpu.dot_dimension_numbers<[1], [0], [0], [1], [0, 0, 1, 1], [], []>} : vector<2x32xf32>, vector<32x128xf32>, vector<2x128xf32> -> vector<2x128xf32>
    %216 = arith.addf %165, %215 : vector<2x128xf32>
    %217 = vector.extract_strided_slice %216 {offsets = [0, 0], sizes = [2, 96], strides = [1, 1]} : vector<2x128xf32> to vector<2x96xf32>
    %218 = arith.negf %217 : vector<2x96xf32>
    %219 = math.exp %218 : vector<2x96xf32>
    %cst_48 = arith.constant 1.000000e+00 : f32
    %220 = vector.broadcast %cst_48 : f32 to vector<2x96xf32>
    %221 = arith.addf %220, %219 : vector<2x96xf32>
    %222 = arith.divf %220, %221 : vector<2x96xf32>
    %223 = vector.extract_strided_slice %216 {offsets = [0, 96], sizes = [2, 32], strides = [1, 1]} : vector<2x128xf32> to vector<2x32xf32>
    %224 = math.tanh %223 : vector<2x32xf32>
    %225 = vector.extract_strided_slice %222 {offsets = [0, 0], sizes = [2, 32], strides = [1, 1]} : vector<2x96xf32> to vector<2x32xf32>
    %226 = vector.extract_strided_slice %222 {offsets = [0, 32], sizes = [2, 32], strides = [1, 1]} : vector<2x96xf32> to vector<2x32xf32>
    %227 = vector.extract_strided_slice %222 {offsets = [0, 64], sizes = [2, 32], strides = [1, 1]} : vector<2x96xf32> to vector<2x32xf32>
    %228 = arith.mulf %226, %208 : vector<2x32xf32>
    %229 = arith.mulf %225, %224 : vector<2x32xf32>
    %230 = arith.addf %228, %229 : vector<2x32xf32>
    %231 = math.tanh %230 : vector<2x32xf32>
    %232 = arith.mulf %227, %231 : vector<2x32xf32>
    %cst_49 = arith.constant dense<0.000000e+00> : vector<2x16xf32>
    %233 = tpu.matmul %232, %167, %cst_49 {dimension_numbers = #tpu.dot_dimension_numbers<[1], [0], [0], [1], [0, 0, 1, 1], [], []>} : vector<2x32xf32>, vector<32x16xf32>, vector<2x16xf32> -> vector<2x16xf32>
    %234 = vector.broadcast %168 : vector<1x16xf32> to vector<2x16xf32>
    %235 = arith.addf %233, %234 : vector<2x16xf32>
    %c0_50 = arith.constant 0 : index
    %c32 = arith.constant 32 : index
    %236 = vector.load %arg9[%c0_50, %c32] : memref<2x128xf32, #tpu.memory_space<vmem>>, vector<2x16xf32>
    tpu.vector_store %arg9[%c0_50, %c32], %235 {strides = array<i32>} : memref<2x128xf32, #tpu.memory_space<vmem>>, vector<2x16xf32>,
    %cst_51 = arith.constant dense<0.000000e+00> : vector<2x128xf32>
    %237 = tpu.matmul %232, %166, %cst_51 {dimension_numbers = #tpu.dot_dimension_numbers<[1], [0], [0], [1], [0, 0, 1, 1], [], []>} : vector<2x32xf32>, vector<32x128xf32>, vector<2x128xf32> -> vector<2x128xf32>
    %238 = arith.addf %165, %237 : vector<2x128xf32>
    %239 = vector.extract_strided_slice %238 {offsets = [0, 0], sizes = [2, 96], strides = [1, 1]} : vector<2x128xf32> to vector<2x96xf32>
    %240 = arith.negf %239 : vector<2x96xf32>
    %241 = math.exp %240 : vector<2x96xf32>
    %cst_52 = arith.constant 1.000000e+00 : f32
    %242 = vector.broadcast %cst_52 : f32 to vector<2x96xf32>
    %243 = arith.addf %242, %241 : vector<2x96xf32>
    %244 = arith.divf %242, %243 : vector<2x96xf32>
    %245 = vector.extract_strided_slice %238 {offsets = [0, 96], sizes = [2, 32], strides = [1, 1]} : vector<2x128xf32> to vector<2x32xf32>
    %246 = math.tanh %245 : vector<2x32xf32>
    %247 = vector.extract_strided_slice %244 {offsets = [0, 0], sizes = [2, 32], strides = [1, 1]} : vector<2x96xf32> to vector<2x32xf32>
    %248 = vector.extract_strided_slice %244 {offsets = [0, 32], sizes = [2, 32], strides = [1, 1]} : vector<2x96xf32> to vector<2x32xf32>
    %249 = vector.extract_strided_slice %244 {offsets = [0, 64], sizes = [2, 32], strides = [1, 1]} : vector<2x96xf32> to vector<2x32xf32>
    %250 = arith.mulf %248, %230 : vector<2x32xf32>
    %251 = arith.mulf %247, %246 : vector<2x32xf32>
    %252 = arith.addf %250, %251 : vector<2x32xf32>
    %253 = math.tanh %252 : vector<2x32xf32>
    %254 = arith.mulf %249, %253 : vector<2x32xf32>
    %cst_53 = arith.constant dense<0.000000e+00> : vector<2x16xf32>
    %255 = tpu.matmul %254, %167, %cst_53 {dimension_numbers = #tpu.dot_dimension_numbers<[1], [0], [0], [1], [0, 0, 1, 1], [], []>} : vector<2x32xf32>, vector<32x16xf32>, vector<2x16xf32> -> vector<2x16xf32>
    %256 = vector.broadcast %168 : vector<1x16xf32> to vector<2x16xf32>
    %257 = arith.addf %255, %256 : vector<2x16xf32>
    %c0_54 = arith.constant 0 : index
    %c48 = arith.constant 48 : index
    %258 = vector.load %arg9[%c0_54, %c48] : memref<2x128xf32, #tpu.memory_space<vmem>>, vector<2x16xf32>
    tpu.vector_store %arg9[%c0_54, %c48], %257 {strides = array<i32>} : memref<2x128xf32, #tpu.memory_space<vmem>>, vector<2x16xf32>,
    %cst_55 = arith.constant dense<0.000000e+00> : vector<2x128xf32>
    %259 = tpu.matmul %254, %166, %cst_55 {dimension_numbers = #tpu.dot_dimension_numbers<[1], [0], [0], [1], [0, 0, 1, 1], [], []>} : vector<2x32xf32>, vector<32x128xf32>, vector<2x128xf32> -> vector<2x128xf32>
    %260 = arith.addf %165, %259 : vector<2x128xf32>
    %261 = vector.extract_strided_slice %260 {offsets = [0, 0], sizes = [2, 96], strides = [1, 1]} : vector<2x128xf32> to vector<2x96xf32>
    %262 = arith.negf %261 : vector<2x96xf32>
    %263 = math.exp %262 : vector<2x96xf32>
    %cst_56 = arith.constant 1.000000e+00 : f32
    %264 = vector.broadcast %cst_56 : f32 to vector<2x96xf32>
    %265 = arith.addf %264, %263 : vector<2x96xf32>
    %266 = arith.divf %264, %265 : vector<2x96xf32>
    %267 = vector.extract_strided_slice %260 {offsets = [0, 96], sizes = [2, 32], strides = [1, 1]} : vector<2x128xf32> to vector<2x32xf32>
    %268 = math.tanh %267 : vector<2x32xf32>
    %269 = vector.extract_strided_slice %266 {offsets = [0, 0], sizes = [2, 32], strides = [1, 1]} : vector<2x96xf32> to vector<2x32xf32>
    %270 = vector.extract_strided_slice %266 {offsets = [0, 32], sizes = [2, 32], strides = [1, 1]} : vector<2x96xf32> to vector<2x32xf32>
    %271 = vector.extract_strided_slice %266 {offsets = [0, 64], sizes = [2, 32], strides = [1, 1]} : vector<2x96xf32> to vector<2x32xf32>
    %272 = arith.mulf %270, %252 : vector<2x32xf32>
    %273 = arith.mulf %269, %268 : vector<2x32xf32>
    %274 = arith.addf %272, %273 : vector<2x32xf32>
    %275 = math.tanh %274 : vector<2x32xf32>
    %276 = arith.mulf %271, %275 : vector<2x32xf32>
    %cst_57 = arith.constant dense<0.000000e+00> : vector<2x16xf32>
    %277 = tpu.matmul %276, %167, %cst_57 {dimension_numbers = #tpu.dot_dimension_numbers<[1], [0], [0], [1], [0, 0, 1, 1], [], []>} : vector<2x32xf32>, vector<32x16xf32>, vector<2x16xf32> -> vector<2x16xf32>
    %278 = vector.broadcast %168 : vector<1x16xf32> to vector<2x16xf32>
    %279 = arith.addf %277, %278 : vector<2x16xf32>
    %c0_58 = arith.constant 0 : index
    %c64 = arith.constant 64 : index
    %280 = vector.load %arg9[%c0_58, %c64] : memref<2x128xf32, #tpu.memory_space<vmem>>, vector<2x16xf32>
    tpu.vector_store %arg9[%c0_58, %c64], %279 {strides = array<i32>} : memref<2x128xf32, #tpu.memory_space<vmem>>, vector<2x16xf32>,
    %cst_59 = arith.constant dense<0.000000e+00> : vector<2x128xf32>
    %281 = tpu.matmul %276, %166, %cst_59 {dimension_numbers = #tpu.dot_dimension_numbers<[1], [0], [0], [1], [0, 0, 1, 1], [], []>} : vector<2x32xf32>, vector<32x128xf32>, vector<2x128xf32> -> vector<2x128xf32>
    %282 = arith.addf %165, %281 : vector<2x128xf32>
    %283 = vector.extract_strided_slice %282 {offsets = [0, 0], sizes = [2, 96], strides = [1, 1]} : vector<2x128xf32> to vector<2x96xf32>
    %284 = arith.negf %283 : vector<2x96xf32>
    %285 = math.exp %284 : vector<2x96xf32>
    %cst_60 = arith.constant 1.000000e+00 : f32
    %286 = vector.broadcast %cst_60 : f32 to vector<2x96xf32>
    %287 = arith.addf %286, %285 : vector<2x96xf32>
    %288 = arith.divf %286, %287 : vector<2x96xf32>
    %289 = vector.extract_strided_slice %282 {offsets = [0, 96], sizes = [2, 32], strides = [1, 1]} : vector<2x128xf32> to vector<2x32xf32>
    %290 = math.tanh %289 : vector<2x32xf32>
    %291 = vector.extract_strided_slice %288 {offsets = [0, 0], sizes = [2, 32], strides = [1, 1]} : vector<2x96xf32> to vector<2x32xf32>
    %292 = vector.extract_strided_slice %288 {offsets = [0, 32], sizes = [2, 32], strides = [1, 1]} : vector<2x96xf32> to vector<2x32xf32>
    %293 = vector.extract_strided_slice %288 {offsets = [0, 64], sizes = [2, 32], strides = [1, 1]} : vector<2x96xf32> to vector<2x32xf32>
    %294 = arith.mulf %292, %274 : vector<2x32xf32>
    %295 = arith.mulf %291, %290 : vector<2x32xf32>
    %296 = arith.addf %294, %295 : vector<2x32xf32>
    %297 = math.tanh %296 : vector<2x32xf32>
    %298 = arith.mulf %293, %297 : vector<2x32xf32>
    %cst_61 = arith.constant dense<0.000000e+00> : vector<2x16xf32>
    %299 = tpu.matmul %298, %167, %cst_61 {dimension_numbers = #tpu.dot_dimension_numbers<[1], [0], [0], [1], [0, 0, 1, 1], [], []>} : vector<2x32xf32>, vector<32x16xf32>, vector<2x16xf32> -> vector<2x16xf32>
    %300 = vector.broadcast %168 : vector<1x16xf32> to vector<2x16xf32>
    %301 = arith.addf %299, %300 : vector<2x16xf32>
    %c0_62 = arith.constant 0 : index
    %c80 = arith.constant 80 : index
    %302 = vector.load %arg9[%c0_62, %c80] : memref<2x128xf32, #tpu.memory_space<vmem>>, vector<2x16xf32>
    tpu.vector_store %arg9[%c0_62, %c80], %301 {strides = array<i32>} : memref<2x128xf32, #tpu.memory_space<vmem>>, vector<2x16xf32>,
    %cst_63 = arith.constant dense<0.000000e+00> : vector<2x128xf32>
    %303 = tpu.matmul %298, %166, %cst_63 {dimension_numbers = #tpu.dot_dimension_numbers<[1], [0], [0], [1], [0, 0, 1, 1], [], []>} : vector<2x32xf32>, vector<32x128xf32>, vector<2x128xf32> -> vector<2x128xf32>
    %304 = arith.addf %165, %303 : vector<2x128xf32>
    %305 = vector.extract_strided_slice %304 {offsets = [0, 0], sizes = [2, 96], strides = [1, 1]} : vector<2x128xf32> to vector<2x96xf32>
    %306 = arith.negf %305 : vector<2x96xf32>
    %307 = math.exp %306 : vector<2x96xf32>
    %cst_64 = arith.constant 1.000000e+00 : f32
    %308 = vector.broadcast %cst_64 : f32 to vector<2x96xf32>
    %309 = arith.addf %308, %307 : vector<2x96xf32>
    %310 = arith.divf %308, %309 : vector<2x96xf32>
    %311 = vector.extract_strided_slice %304 {offsets = [0, 96], sizes = [2, 32], strides = [1, 1]} : vector<2x128xf32> to vector<2x32xf32>
    %312 = math.tanh %311 : vector<2x32xf32>
    %313 = vector.extract_strided_slice %310 {offsets = [0, 0], sizes = [2, 32], strides = [1, 1]} : vector<2x96xf32> to vector<2x32xf32>
    %314 = vector.extract_strided_slice %310 {offsets = [0, 32], sizes = [2, 32], strides = [1, 1]} : vector<2x96xf32> to vector<2x32xf32>
    %315 = vector.extract_strided_slice %310 {offsets = [0, 64], sizes = [2, 32], strides = [1, 1]} : vector<2x96xf32> to vector<2x32xf32>
    %316 = arith.mulf %314, %296 : vector<2x32xf32>
    %317 = arith.mulf %313, %312 : vector<2x32xf32>
    %318 = arith.addf %316, %317 : vector<2x32xf32>
    %319 = math.tanh %318 : vector<2x32xf32>
    %320 = arith.mulf %315, %319 : vector<2x32xf32>
    %cst_65 = arith.constant dense<0.000000e+00> : vector<2x16xf32>
    %321 = tpu.matmul %320, %167, %cst_65 {dimension_numbers = #tpu.dot_dimension_numbers<[1], [0], [0], [1], [0, 0, 1, 1], [], []>} : vector<2x32xf32>, vector<32x16xf32>, vector<2x16xf32> -> vector<2x16xf32>
    %322 = vector.broadcast %168 : vector<1x16xf32> to vector<2x16xf32>
    %323 = arith.addf %321, %322 : vector<2x16xf32>
    %c0_66 = arith.constant 0 : index
    %c96 = arith.constant 96 : index
    %324 = vector.load %arg9[%c0_66, %c96] : memref<2x128xf32, #tpu.memory_space<vmem>>, vector<2x16xf32>
    tpu.vector_store %arg9[%c0_66, %c96], %323 {strides = array<i32>} : memref<2x128xf32, #tpu.memory_space<vmem>>, vector<2x16xf32>,
    %cst_67 = arith.constant dense<0.000000e+00> : vector<2x128xf32>
    %325 = tpu.matmul %320, %166, %cst_67 {dimension_numbers = #tpu.dot_dimension_numbers<[1], [0], [0], [1], [0, 0, 1, 1], [], []>} : vector<2x32xf32>, vector<32x128xf32>, vector<2x128xf32> -> vector<2x128xf32>
    %326 = arith.addf %165, %325 : vector<2x128xf32>
    %327 = vector.extract_strided_slice %326 {offsets = [0, 0], sizes = [2, 96], strides = [1, 1]} : vector<2x128xf32> to vector<2x96xf32>
    %328 = arith.negf %327 : vector<2x96xf32>
    %329 = math.exp %328 : vector<2x96xf32>
    %cst_68 = arith.constant 1.000000e+00 : f32
    %330 = vector.broadcast %cst_68 : f32 to vector<2x96xf32>
    %331 = arith.addf %330, %329 : vector<2x96xf32>
    %332 = arith.divf %330, %331 : vector<2x96xf32>
    %333 = vector.extract_strided_slice %326 {offsets = [0, 96], sizes = [2, 32], strides = [1, 1]} : vector<2x128xf32> to vector<2x32xf32>
    %334 = math.tanh %333 : vector<2x32xf32>
    %335 = vector.extract_strided_slice %332 {offsets = [0, 0], sizes = [2, 32], strides = [1, 1]} : vector<2x96xf32> to vector<2x32xf32>
    %336 = vector.extract_strided_slice %332 {offsets = [0, 32], sizes = [2, 32], strides = [1, 1]} : vector<2x96xf32> to vector<2x32xf32>
    %337 = vector.extract_strided_slice %332 {offsets = [0, 64], sizes = [2, 32], strides = [1, 1]} : vector<2x96xf32> to vector<2x32xf32>
    %338 = arith.mulf %336, %318 : vector<2x32xf32>
    %339 = arith.mulf %335, %334 : vector<2x32xf32>
    %340 = arith.addf %338, %339 : vector<2x32xf32>
    %341 = math.tanh %340 : vector<2x32xf32>
    %342 = arith.mulf %337, %341 : vector<2x32xf32>
    %cst_69 = arith.constant dense<0.000000e+00> : vector<2x16xf32>
    %343 = tpu.matmul %342, %167, %cst_69 {dimension_numbers = #tpu.dot_dimension_numbers<[1], [0], [0], [1], [0, 0, 1, 1], [], []>} : vector<2x32xf32>, vector<32x16xf32>, vector<2x16xf32> -> vector<2x16xf32>
    %344 = vector.broadcast %168 : vector<1x16xf32> to vector<2x16xf32>
    %345 = arith.addf %343, %344 : vector<2x16xf32>
    %c0_70 = arith.constant 0 : index
    %c112 = arith.constant 112 : index
    %346 = vector.load %arg9[%c0_70, %c112] : memref<2x128xf32, #tpu.memory_space<vmem>>, vector<2x16xf32>
    tpu.vector_store %arg9[%c0_70, %c112], %345 {strides = array<i32>} : memref<2x128xf32, #tpu.memory_space<vmem>>, vector<2x16xf32>,
    return
  }
}

</mosaic_0001>

<llo_original>
// kernel: tpu_custom_call.1
$region0: #{tpu_custom_call.1}
  #allocation0 [shape = 'u32[]', space=smem, size = 0x4, offset = 0x4, fixed_abs, tag = 'smem constant byte address 0x4 - core index']
  #allocation1 [shape = 'u32[144,128]{1,0:T(1,128)}', space=vmem, size = 0x12000, scoped, tag = 'internal scratch']
  %s0 = inlined_call_operand.hbm [shape: f32[16,16], index: 0, kind: input, shape index: {}]
  %s1 = inlined_call_operand.hbm [shape: f32[16,128], index: 1, kind: input, shape index: {}]
  %s2 = inlined_call_operand.vmem [shape: f32[32,128], index: 2, kind: input, shape index: {}]
  %s3 = inlined_call_operand.vmem [shape: f32[1,128], index: 3, kind: input, shape index: {}]
  %s4 = inlined_call_operand.hbm [shape: f32[32,128], index: 4, kind: input, shape index: {}]
  %s5 = inlined_call_operand.vmem [shape: f32[32,128], index: 5, kind: input, shape index: {}]
  %s6 = inlined_call_operand.vmem [shape: f32[1,128], index: 6, kind: input, shape index: {}]
  %s7 = inlined_call_operand.vmem [shape: f32[32,16], index: 7, kind: input, shape index: {}]
  %s8 = inlined_call_operand.vmem [shape: f32[1,16], index: 8, kind: input, shape index: {}]
  %s9 = inlined_call_operand.hbm [shape: f32[2,128], index: 9, kind: output, shape index: {}]
  %s10 = sld [smem:[#allocation0]]
  $region58: #{tpu_custom_call.1} parent=0
    _
  %s12 = ssub.s32 1, %s10
  %s13 = scalar_select 0, %s12, %s10
  $region1: #{tpu_custom_call.1} parent=0
    #allocation2 [shape = 'u8[8192]{0}', space=vmem, size = 0x2000, scoped, tag = 'input window, operand 0, single buffered']
    #allocation3 [shape = 's32[1]{0}', space=sflag, size = 0x4, scoped, tag = 'scoped memory for tpu_custom_call.1']
    #allocation4 [shape = 's32[1]{0}', space=sflag, size = 0x4, scoped, tag = 'scoped memory for tpu_custom_call.1']
    #allocation5 [shape = 'u8[8192]{0}', space=vmem, size = 0x2000, scoped, tag = 'input window, operand 1, single buffered']
    #allocation6 [shape = 's32[1]{0}', space=sflag, size = 0x4, scoped, tag = 'scoped memory for tpu_custom_call.1']
    #allocation7 [shape = 'u8[16384]{0}', space=vmem, size = 0x4000, scoped, tag = 'input window, operand 4, single buffered']
    #allocation8 [shape = 'u8[1024]{0}', space=vmem, size = 0x400, scoped, tag = 'output window, operand 0, single buffered']
    %14 = vsyncpa [#allocation3], 0
    %15 = vsyncpa [#allocation6], 0
    %16 = vsyncpa [#allocation4], 0
    // Predicated region
    $region2: #{tpu_custom_call.1} parent=1 // pred_check
      _
    $region3: #{tpu_custom_call.1} parent=1 // pred_check_branch
      %18 = sbr.rel (0) target = $region5
    $region4: #{tpu_custom_call.1} parent=1 // pred_region
      %s20 = ssub.s32 256, 256
      %21 = vsyncadd [#allocation3], %s20
      %s22 = sshll.u32 [#allocation2], 4
      %s23 = int_to_ptr.vmem [resolvable:$true] %s22
      %28 = dma.hbm_to_vmem [thread:$0]  %s0, 256, %s23, [#allocation3], 128, 128, 8
    $region5: #{tpu_custom_call.1} parent=1 // pred_fallthru
      _
    // Predicated region
    $region6: #{tpu_custom_call.1} parent=1 // pred_check
      _
    $region7: #{tpu_custom_call.1} parent=1 // pred_check_branch
      %30 = sbr.rel (0) target = $region9
    $region8: #{tpu_custom_call.1} parent=1 // pred_region
      %s32 = ssub.s32 256, 256
      %33 = vsyncadd [#allocation6], %s32
      %s34 = sshll.u32 [#allocation5], 4
      %s35 = int_to_ptr.vmem [resolvable:$true] %s34
      %40 = dma.hbm_to_vmem [thread:$0]  %s1, 256, %s35, [#allocation6], 128, 128, 8
    $region9: #{tpu_custom_call.1} parent=1 // pred_fallthru
      _
    // Predicated region
    $region10: #{tpu_custom_call.1} parent=1 // pred_check
      _
    $region11: #{tpu_custom_call.1} parent=1 // pred_check_branch
      %42 = sbr.rel (0) target = $region13
    $region12: #{tpu_custom_call.1} parent=1 // pred_region
      _
    $region13: #{tpu_custom_call.1} parent=1 // pred_fallthru
      _
    // Predicated region
    $region14: #{tpu_custom_call.1} parent=1 // pred_check
      _
    $region15: #{tpu_custom_call.1} parent=1 // pred_check_branch
      %44 = sbr.rel (0) target = $region17
    $region16: #{tpu_custom_call.1} parent=1 // pred_region
      _
    $region17: #{tpu_custom_call.1} parent=1 // pred_fallthru
      _
    // Predicated region
    $region18: #{tpu_custom_call.1} parent=1 // pred_check
      _
    $region19: #{tpu_custom_call.1} parent=1 // pred_check_branch
      %46 = sbr.rel (0) target = $region21
    $region20: #{tpu_custom_call.1} parent=1 // pred_region
      %s48 = ssub.s32 512, 512
      %49 = vsyncadd [#allocation6], %s48
      %s50 = sshll.u32 [#allocation7], 4
      %s51 = int_to_ptr.vmem [resolvable:$true] %s50
      %56 = dma.hbm_to_vmem [thread:$0]  %s4, 512, %s51, [#allocation6], 128, 128, 8
    $region21: #{tpu_custom_call.1} parent=1 // pred_fallthru
      _
    // Predicated region
    $region22: #{tpu_custom_call.1} parent=1 // pred_check
      _
    $region23: #{tpu_custom_call.1} parent=1 // pred_check_branch
      %58 = sbr.rel (0) target = $region25
    $region24: #{tpu_custom_call.1} parent=1 // pred_region
      _
    $region25: #{tpu_custom_call.1} parent=1 // pred_fallthru
      _
    // Predicated region
    $region26: #{tpu_custom_call.1} parent=1 // pred_check
      _
    $region27: #{tpu_custom_call.1} parent=1 // pred_check_branch
      %60 = sbr.rel (0) target = $region29
    $region28: #{tpu_custom_call.1} parent=1 // pred_region
      _
    $region29: #{tpu_custom_call.1} parent=1 // pred_fallthru
      _
    // Predicated region
    $region30: #{tpu_custom_call.1} parent=1 // pred_check
      _
    $region31: #{tpu_custom_call.1} parent=1 // pred_check_branch
      %62 = sbr.rel (0) target = $region33
    $region32: #{tpu_custom_call.1} parent=1 // pred_region
      _
    $region33: #{tpu_custom_call.1} parent=1 // pred_fallthru
      _
    // Predicated region
    $region34: #{tpu_custom_call.1} parent=1 // pred_check
      _
    $region35: #{tpu_custom_call.1} parent=1 // pred_check_branch
      %64 = sbr.rel (0) target = $region37
    $region36: #{tpu_custom_call.1} parent=1 // pred_region
      _
    $region37: #{tpu_custom_call.1} parent=1 // pred_fallthru
      _
    // Predicated region
    $region38: #{tpu_custom_call.1} parent=1 // pred_check
      _
    $region39: #{tpu_custom_call.1} parent=1 // pred_check_branch
      %66 = sbr.rel (0) target = $region41
    $region40: #{tpu_custom_call.1} parent=1 // pred_region
      %67 = dma.done [#allocation3], 256
    $region41: #{tpu_custom_call.1} parent=1 // pred_fallthru
      _
    // Predicated region
    $region42: #{tpu_custom_call.1} parent=1 // pred_check
      _
    $region43: #{tpu_custom_call.1} parent=1 // pred_check_branch
      %69 = sbr.rel (0) target = $region45
    $region44: #{tpu_custom_call.1} parent=1 // pred_region
      %70 = dma.done [#allocation6], 256
    $region45: #{tpu_custom_call.1} parent=1 // pred_fallthru
      _
    // Predicated region
    $region46: #{tpu_custom_call.1} parent=1 // pred_check
      _
    $region47: #{tpu_custom_call.1} parent=1 // pred_check_branch
      %72 = sbr.rel (0) target = $region49
    $region48: #{tpu_custom_call.1} parent=1 // pred_region
      %73 = dma.done [#allocation6], 512
    $region49: #{tpu_custom_call.1} parent=1 // pred_fallthru
      _
    %v74 = vld [vmem:[#allocation2] sm:$0xff]
    %v75 = vld [vmem:[#allocation2 + $0x8] sm:$0xff]
    %v76 = vld [vmem:[#allocation5] sm:$0xff]
    %v77 = vld [vmem:[#allocation5 + $0x8] sm:$0xff]
    %v78 = vld [vmem:[%s3] sm:$0x1]
    %v80 = vlaneseq
    %v81 = vshrl.u32 %v80, 7
    %v82 = vsub.s32 0, %v81
    %v83 = vrot.slane %v78, %v82
    %vm85 = vcmask 130048
    %v87 = vsel %vm85, %v74, 0
    %v90 = vsel %vm85, %v75, 0
    %92 = vmatprep.subr.mxu0 0.0
    %93 = vmatpush1.msra.mxu0 %v76
    %94 = vmatprep.subr.mxu0 0.0
    %95 = vmatpush1.msra.mxu0 %v77
    %96 = vmatprep.subr.mxu0 0.0
    %97 = vmatpush1.msra.mxu0 0.0
    %98 = vmatprep.subr.mxu0 0.0
    %99 = vmatpush1.msra.mxu0 0.0
    %100 = vmatprep.subr.mxu0 0.0
    %101 = vmatpush1.msra.mxu0 0.0
    %102 = vmatprep.subr.mxu0 0.0
    %103 = vmatpush1.msra.mxu0 0.0
    %104 = vmatprep.subr.mxu0 0.0
    %105 = vmatpush1.msra.mxu0 0.0
    %106 = vmatprep.subr.mxu0 0.0
    %107 = vmatpush1.msra.mxu0 0.0
    %108 = vmatprep.subr.mxu0 0.0
    %109 = vmatpush1.msra.mxu0 0.0
    %110 = vmatprep.subr.mxu0 0.0
    %111 = vmatpush1.msra.mxu0 0.0
    %112 = vmatprep.subr.mxu0 0.0
    %113 = vmatpush1.msra.mxu0 0.0
    %114 = vmatprep.subr.mxu0 0.0
    %115 = vmatpush1.msra.mxu0 0.0
    %116 = vmatprep.subr.mxu0 0.0
    %117 = vmatpush1.msra.mxu0 0.0
    %118 = vmatprep.subr.mxu0 0.0
    %119 = vmatpush1.msra.mxu0 0.0
    %120 = vmatprep.subr.mxu0 0.0
    %121 = vmatpush1.msra.mxu0 0.0
    %122 = vmatprep.subr.mxu0 0.0
    %123 = vmatpush1.msra.mxu0 0.0
    %124 = vmatprep.subr.mxu0 0.0
    %125 = vmatpush1.msra.mxu0 0.0
    %126 = vmatprep.subr.mxu0 0.0
    %127 = vmatpush1.msra.mxu0 0.0
    %128 = vmatprep.subr.mxu0 0.0
    %129 = vmatpush1.msra.mxu0 0.0
    %130 = vmatprep.subr.mxu0 0.0
    %131 = vmatpush1.msra.mxu0 0.0
    %132 = vmatprep.subr.mxu0 0.0
    %133 = vmatpush1.msra.mxu0 0.0
    %134 = vmatprep.subr.mxu0 0.0
    %135 = vmatpush1.msra.mxu0 0.0
    %136 = vmatprep.subr.mxu0 0.0
    %137 = vmatpush1.msra.mxu0 0.0
    %138 = vmatprep.subr.mxu0 0.0
    %139 = vmatpush1.msra.mxu0 0.0
    %140 = vmatprep.subr.mxu0 0.0
    %141 = vmatpush1.msra.mxu0 0.0
    %142 = vmatprep.subr.mxu0 0.0
    %143 = vmatpush1.msra.mxu0 0.0
    %144 = vmatprep.subr.mxu0 0.0
    %145 = vmatpush1.msra.mxu0 0.0
    %146 = vmatprep.subr.mxu0 0.0
    %147 = vmatpush1.msra.mxu0 0.0
    %148 = vmatprep.subr.mxu0 0.0
    %149 = vmatpush1.msra.mxu0 0.0
    %150 = vmatprep.subr.mxu0 0.0
    %151 = vmatpush1.msra.mxu0 0.0
    %152 = vmatprep.subr.mxu0 0.0
    %153 = vmatpush1.msra.mxu0 0.0
    %154 = vmatprep.subr.mxu0 0.0
    %155 = vmatpush1.msra.mxu0 0.0
    %156 = vmatprep.mubr.f32.mxu0 0.0
    %157 = vmatmul.mubr.f32.gmra.mrb[0].mxu0 %v87
    %v158 = vpop.f32.mrb[0].mxu0
    %v159 = vadd.f32 %v83, %v158
    %v160 = vpop.f32.mrb[0].mxu0
    %161 = vmatprep.mubr.f32.mxu0 0.0
    %162 = vmatmul.mubr.f32.gmra.mrb[0].mxu0 %v90
    %v163 = vpop.f32.mrb[0].mxu0
    %v164 = vadd.f32 %v83, %v163
    %v165 = vpop.f32.mrb[0].mxu0
    %166 = vdwg.mxu0
    %v167 = vld [vmem:[%s2] sm:$0xff]
    %v168 = vld [vmem:[%s2 + $0x8] sm:$0xff]
    %v169 = vld [vmem:[%s2 + $0x10] sm:$0xff]
    %v170 = vld [vmem:[%s2 + $0x18] sm:$0xff]
    %vm171 = vcmask 261120
    %v173 = vsel %vm171, 0.0, 0
    %175 = vmatprep.subr.mxu0 0.0
    %176 = vmatpush1.msra.mxu0 %v167
    %177 = vmatprep.subr.mxu0 0.0
    %178 = vmatpush1.msra.mxu0 %v168
    %179 = vmatprep.subr.mxu0 0.0
    %180 = vmatpush1.msra.mxu0 %v169
    %181 = vmatprep.subr.mxu0 0.0
    %182 = vmatpush1.msra.mxu0 %v170
    %183 = vmatprep.subr.mxu0 0.0
    %184 = vmatpush1.msra.mxu0 0.0
    %185 = vmatprep.subr.mxu0 0.0
    %186 = vmatpush1.msra.mxu0 0.0
    %187 = vmatprep.subr.mxu0 0.0
    %188 = vmatpush1.msra.mxu0 0.0
    %189 = vmatprep.subr.mxu0 0.0
    %190 = vmatpush1.msra.mxu0 0.0
    %191 = vmatprep.subr.mxu0 0.0
    %192 = vmatpush1.msra.mxu0 0.0
    %193 = vmatprep.subr.mxu0 0.0
    %194 = vmatpush1.msra.mxu0 0.0
    %195 = vmatprep.subr.mxu0 0.0
    %196 = vmatpush1.msra.mxu0 0.0
    %197 = vmatprep.subr.mxu0 0.0
    %198 = vmatpush1.msra.mxu0 0.0
    %199 = vmatprep.subr.mxu0 0.0
    %200 = vmatpush1.msra.mxu0 0.0
    %201 = vmatprep.subr.mxu0 0.0
    %202 = vmatpush1.msra.mxu0 0.0
    %203 = vmatprep.subr.mxu0 0.0
    %204 = vmatpush1.msra.mxu0 0.0
    %205 = vmatprep.subr.mxu0 0.0
    %206 = vmatpush1.msra.mxu0 0.0
    %207 = vmatprep.subr.mxu0 0.0
    %208 = vmatpush1.msra.mxu0 0.0
    %209 = vmatprep.subr.mxu0 0.0
    %210 = vmatpush1.msra.mxu0 0.0
    %211 = vmatprep.subr.mxu0 0.0
    %212 = vmatpush1.msra.mxu0 0.0
    %213 = vmatprep.subr.mxu0 0.0
    %214 = vmatpush1.msra.mxu0 0.0
    %215 = vmatprep.subr.mxu0 0.0
    %216 = vmatpush1.msra.mxu0 0.0
    %217 = vmatprep.subr.mxu0 0.0
    %218 = vmatpush1.msra.mxu0 0.0
    %219 = vmatprep.subr.mxu0 0.0
    %220 = vmatpush1.msra.mxu0 0.0
    %221 = vmatprep.subr.mxu0 0.0
    %222 = vmatpush1.msra.mxu0 0.0
    %223 = vmatprep.subr.mxu0 0.0
    %224 = vmatpush1.msra.mxu0 0.0
    %225 = vmatprep.subr.mxu0 0.0
    %226 = vmatpush1.msra.mxu0 0.0
    %227 = vmatprep.subr.mxu0 0.0
    %228 = vmatpush1.msra.mxu0 0.0
    %229 = vmatprep.subr.mxu0 0.0
    %230 = vmatpush1.msra.mxu0 0.0
    %231 = vmatprep.subr.mxu0 0.0
    %232 = vmatpush1.msra.mxu0 0.0
    %233 = vmatprep.subr.mxu0 0.0
    %234 = vmatpush1.msra.mxu0 0.0
    %235 = vmatprep.subr.mxu0 0.0
    %236 = vmatpush1.msra.mxu0 0.0
    %237 = vmatprep.subr.mxu0 0.0
    %238 = vmatpush1.msra.mxu0 0.0
    %239 = vmatprep.mubr.f32.mxu0 0.0
    %240 = vmatmul.mubr.f32.gmra.mrb[0].mxu0 %v173
    %v241 = vpop.f32.mrb[0].mxu0
    %v242 = vadd.f32 0.0, %v241
    %v243 = vpop.f32.mrb[0].mxu0
    %244 = vdwg.mxu0
    %v245 = vadd.f32 %v159, %v242
    %v246 = vxor.u32 %v245, 2147483648
    %v247 = vmul.f32 %v246, 1.442695
    %v248 = vpow.pop %v247
    %v249 = vadd.f32 %v248, 1.0
    %v250 = vrcp.pop %v249
    %v251 = vmul.f32 1.0, %v250
    %v252 = vtanh.pop %v245
    %v253 = vmul.f32 %v251, 0.0
    %255 = vrot.lane.b32.xlu0 %v252, 32
    %v256 = vpop.permute.xlu0 %255
    %v258 = vmul.f32 %v251, %v256
    %260 = vrot.lane.b32.xlu0 %v258, 32
    %v261 = vpop.permute.xlu0 %260
    %v263 = vadd.f32 %v253, %v261
    %v264 = vtanh.pop %v263
    %266 = vrot.lane.b32.xlu0 %v264, 32
    %v267 = vpop.permute.xlu0 %266
    %v269 = vmul.f32 %v251, %v267
    %271 = vrot.lane.b32.xlu0 %v269, 64
    %v272 = vpop.permute.xlu0 %271
    %v273 = vsel %vm171, %v272, 0
    %275 = vmatprep.subr.mxu0 0.0
    %276 = vmatpush1.msra.mxu0 %v167
    %277 = vmatprep.subr.mxu0 0.0
    %278 = vmatpush1.msra.mxu0 %v168
    %279 = vmatprep.subr.mxu0 0.0
    %280 = vmatpush1.msra.mxu0 %v169
    %281 = vmatprep.subr.mxu0 0.0
    %282 = vmatpush1.msra.mxu0 %v170
    %283 = vmatprep.subr.mxu0 0.0
    %284 = vmatpush1.msra.mxu0 0.0
    %285 = vmatprep.subr.mxu0 0.0
    %286 = vmatpush1.msra.mxu0 0.0
    %287 = vmatprep.subr.mxu0 0.0
    %288 = vmatpush1.msra.mxu0 0.0
    %289 = vmatprep.subr.mxu0 0.0
    %290 = vmatpush1.msra.mxu0 0.0
    %291 = vmatprep.subr.mxu0 0.0
    %292 = vmatpush1.msra.mxu0 0.0
    %293 = vmatprep.subr.mxu0 0.0
    %294 = vmatpush1.msra.mxu0 0.0
    %295 = vmatprep.subr.mxu0 0.0
    %296 = vmatpush1.msra.mxu0 0.0
    %297 = vmatprep.subr.mxu0 0.0
    %298 = vmatpush1.msra.mxu0 0.0
    %299 = vmatprep.subr.mxu0 0.0
    %300 = vmatpush1.msra.mxu0 0.0
    %301 = vmatprep.subr.mxu0 0.0
    %302 = vmatpush1.msra.mxu0 0.0
    %303 = vmatprep.subr.mxu0 0.0
    %304 = vmatpush1.msra.mxu0 0.0
    %305 = vmatprep.subr.mxu0 0.0
    %306 = vmatpush1.msra.mxu0 0.0
    %307 = vmatprep.subr.mxu0 0.0
    %308 = vmatpush1.msra.mxu0 0.0
    %309 = vmatprep.subr.mxu0 0.0
    %310 = vmatpush1.msra.mxu0 0.0
    %311 = vmatprep.subr.mxu0 0.0
    %312 = vmatpush1.msra.mxu0 0.0
    %313 = vmatprep.subr.mxu0 0.0
    %314 = vmatpush1.msra.mxu0 0.0
    %315 = vmatprep.subr.mxu0 0.0
    %316 = vmatpush1.msra.mxu0 0.0
    %317 = vmatprep.subr.mxu0 0.0
    %318 = vmatpush1.msra.mxu0 0.0
    %319 = vmatprep.subr.mxu0 0.0
    %320 = vmatpush1.msra.mxu0 0.0
    %321 = vmatprep.subr.mxu0 0.0
    %322 = vmatpush1.msra.mxu0 0.0
    %323 = vmatprep.subr.mxu0 0.0
    %324 = vmatpush1.msra.mxu0 0.0
    %325 = vmatprep.subr.mxu0 0.0
    %326 = vmatpush1.msra.mxu0 0.0
    %327 = vmatprep.subr.mxu0 0.0
    %328 = vmatpush1.msra.mxu0 0.0
    %329 = vmatprep.subr.mxu0 0.0
    %330 = vmatpush1.msra.mxu0 0.0
    %331 = vmatprep.subr.mxu0 0.0
    %332 = vmatpush1.msra.mxu0 0.0
    %333 = vmatprep.subr.mxu0 0.0
    %334 = vmatpush1.msra.mxu0 0.0
    %335 = vmatprep.subr.mxu0 0.0
    %336 = vmatpush1.msra.mxu0 0.0
    %337 = vmatprep.subr.mxu0 0.0
    %338 = vmatpush1.msra.mxu0 0.0
    %339 = vmatprep.mubr.f32.mxu0 0.0
    %340 = vmatmul.mubr.f32.gmra.mrb[0].mxu0 %v273
    %v341 = vpop.f32.mrb[0].mxu0
    %v342 = vadd.f32 0.0, %v341
    %v343 = vpop.f32.mrb[0].mxu0
    %344 = vdwg.mxu0
    %v346 = vrot.slane %v342, 6
    %v348 = vadd.f32 %v159, %v346
    %v349 = vxor.u32 %v348, 2147483648
    %v350 = vmul.f32 %v349, 1.442695
    %v351 = vpow.pop %v350
    %v352 = vadd.f32 %v351, 1.0
    %v353 = vrcp.pop %v352
    %v354 = vmul.f32 1.0, %v353
    %v355 = vtanh.pop %v348
    %v357 = vrot.slane %v263, 6
    %v359 = vmul.f32 %v354, %v357
    %361 = vrot.lane.b32.xlu0 %v355, 32
    %v362 = vpop.permute.xlu0 %361
    %v364 = vmul.f32 %v354, %v362
    %366 = vrot.lane.b32.xlu0 %v364, 32
    %v367 = vpop.permute.xlu0 %366
    %v369 = vadd.f32 %v359, %v367
    %v370 = vtanh.pop %v369
    %372 = vrot.lane.b32.xlu0 %v370, 32
    %v373 = vpop.permute.xlu0 %372
    %v375 = vmul.f32 %v354, %v373
    %v377 = vrot.slane %v375, 2
    %378 = vrot.lane.b32.xlu0 %v377, 64
    %v379 = vpop.permute.xlu0 %378
    %v380 = vsel %vm171, %v379, 0
    %382 = vmatprep.subr.mxu0 0.0
    %383 = vmatpush1.msra.mxu0 %v167
    %384 = vmatprep.subr.mxu0 0.0
    %385 = vmatpush1.msra.mxu0 %v168
    %386 = vmatprep.subr.mxu0 0.0
    %387 = vmatpush1.msra.mxu0 %v169
    %388 = vmatprep.subr.mxu0 0.0
    %389 = vmatpush1.msra.mxu0 %v170
    %390 = vmatprep.subr.mxu0 0.0
    %391 = vmatpush1.msra.mxu0 0.0
    %392 = vmatprep.subr.mxu0 0.0
    %393 = vmatpush1.msra.mxu0 0.0
    %394 = vmatprep.subr.mxu0 0.0
    %395 = vmatpush1.msra.mxu0 0.0
    %396 = vmatprep.subr.mxu0 0.0
    %397 = vmatpush1.msra.mxu0 0.0
    %398 = vmatprep.subr.mxu0 0.0
    %399 = vmatpush1.msra.mxu0 0.0
    %400 = vmatprep.subr.mxu0 0.0
    %401 = vmatpush1.msra.mxu0 0.0
    %402 = vmatprep.subr.mxu0 0.0
    %403 = vmatpush1.msra.mxu0 0.0
    %404 = vmatprep.subr.mxu0 0.0
    %405 = vmatpush1.msra.mxu0 0.0
    %406 = vmatprep.subr.mxu0 0.0
    %407 = vmatpush1.msra.mxu0 0.0
    %408 = vmatprep.subr.mxu0 0.0
    %409 = vmatpush1.msra.mxu0 0.0
    %410 = vmatprep.subr.mxu0 0.0
    %411 = vmatpush1.msra.mxu0 0.0
    %412 = vmatprep.subr.mxu0 0.0
    %413 = vmatpush1.msra.mxu0 0.0
    %414 = vmatprep.subr.mxu0 0.0
    %415 = vmatpush1.msra.mxu0 0.0
    %416 = vmatprep.subr.mxu0 0.0
    %417 = vmatpush1.msra.mxu0 0.0
    %418 = vmatprep.subr.mxu0 0.0
    %419 = vmatpush1.msra.mxu0 0.0
    %420 = vmatprep.subr.mxu0 0.0
    %421 = vmatpush1.msra.mxu0 0.0
    %422 = vmatprep.subr.mxu0 0.0
    %423 = vmatpush1.msra.mxu0 0.0
    %424 = vmatprep.subr.mxu0 0.0
    %425 = vmatpush1.msra.mxu0 0.0
    %426 = vmatprep.subr.mxu0 0.0
    %427 = vmatpush1.msra.mxu0 0.0
    %428 = vmatprep.subr.mxu0 0.0
    %429 = vmatpush1.msra.mxu0 0.0
    %430 = vmatprep.subr.mxu0 0.0
    %431 = vmatpush1.msra.mxu0 0.0
    %432 = vmatprep.subr.mxu0 0.0
    %433 = vmatpush1.msra.mxu0 0.0
    %434 = vmatprep.subr.mxu0 0.0
    %435 = vmatpush1.msra.mxu0 0.0
    %436 = vmatprep.subr.mxu0 0.0
    %437 = vmatpush1.msra.mxu0 0.0
    %438 = vmatprep.subr.mxu0 0.0
    %439 = vmatpush1.msra.mxu0 0.0
    %440 = vmatprep.subr.mxu0 0.0
    %441 = vmatpush1.msra.mxu0 0.0
    %442 = vmatprep.subr.mxu0 0.0
    %443 = vmatpush1.msra.mxu0 0.0
    %444 = vmatprep.subr.mxu0 0.0
    %445 = vmatpush1.msra.mxu0 0.0
    %446 = vmatprep.mubr.f32.mxu0 0.0
    %447 = vmatmul.mubr.f32.gmra.mrb[0].mxu0 %v380
    %v448 = vpop.f32.mrb[0].mxu0
    %v449 = vadd.f32 0.0, %v448
    %v450 = vpop.f32.mrb[0].mxu0
    %451 = vdwg.mxu0
    %v453 = vrot.slane %v449, 4
    %v455 = vadd.f32 %v159, %v453
    %v456 = vxor.u32 %v455, 2147483648
    %v457 = vmul.f32 %v456, 1.442695
    %v458 = vpow.pop %v457
    %v459 = vadd.f32 %v458, 1.0
    %v460 = vrcp.pop %v459
    %v461 = vmul.f32 1.0, %v460
    %v462 = vtanh.pop %v455
    %v464 = vrot.slane %v369, 6
    %v466 = vmul.f32 %v461, %v464
    %468 = vrot.lane.b32.xlu0 %v462, 32
    %v469 = vpop.permute.xlu0 %468
    %v471 = vmul.f32 %v461, %v469
    %473 = vrot.lane.b32.xlu0 %v471, 32
    %v474 = vpop.permute.xlu0 %473
    %v476 = vadd.f32 %v466, %v474
    %v477 = vtanh.pop %v476
    %479 = vrot.lane.b32.xlu0 %v477, 32
    %v480 = vpop.permute.xlu0 %479
    %v482 = vmul.f32 %v461, %v480
    %v484 = vrot.slane %v482, 4
    %485 = vrot.lane.b32.xlu0 %v484, 64
    %v486 = vpop.permute.xlu0 %485
    %v487 = vsel %vm171, %v486, 0
    %489 = vmatprep.subr.mxu0 0.0
    %490 = vmatpush1.msra.mxu0 %v167
    %491 = vmatprep.subr.mxu0 0.0
    %492 = vmatpush1.msra.mxu0 %v168
    %493 = vmatprep.subr.mxu0 0.0
    %494 = vmatpush1.msra.mxu0 %v169
    %495 = vmatprep.subr.mxu0 0.0
    %496 = vmatpush1.msra.mxu0 %v170
    %497 = vmatprep.subr.mxu0 0.0
    %498 = vmatpush1.msra.mxu0 0.0
    %499 = vmatprep.subr.mxu0 0.0
    %500 = vmatpush1.msra.mxu0 0.0
    %501 = vmatprep.subr.mxu0 0.0
    %502 = vmatpush1.msra.mxu0 0.0
    %503 = vmatprep.subr.mxu0 0.0
    %504 = vmatpush1.msra.mxu0 0.0
    %505 = vmatprep.subr.mxu0 0.0
    %506 = vmatpush1.msra.mxu0 0.0
    %507 = vmatprep.subr.mxu0 0.0
    %508 = vmatpush1.msra.mxu0 0.0
    %509 = vmatprep.subr.mxu0 0.0
    %510 = vmatpush1.msra.mxu0 0.0
    %511 = vmatprep.subr.mxu0 0.0
    %512 = vmatpush1.msra.mxu0 0.0
    %513 = vmatprep.subr.mxu0 0.0
    %514 = vmatpush1.msra.mxu0 0.0
    %515 = vmatprep.subr.mxu0 0.0
    %516 = vmatpush1.msra.mxu0 0.0
    %517 = vmatprep.subr.mxu0 0.0
    %518 = vmatpush1.msra.mxu0 0.0
    %519 = vmatprep.subr.mxu0 0.0
    %520 = vmatpush1.msra.mxu0 0.0
    %521 = vmatprep.subr.mxu0 0.0
    %522 = vmatpush1.msra.mxu0 0.0
    %523 = vmatprep.subr.mxu0 0.0
    %524 = vmatpush1.msra.mxu0 0.0
    %525 = vmatprep.subr.mxu0 0.0
    %526 = vmatpush1.msra.mxu0 0.0
    %527 = vmatprep.subr.mxu0 0.0
    %528 = vmatpush1.msra.mxu0 0.0
    %529 = vmatprep.subr.mxu0 0.0
    %530 = vmatpush1.msra.mxu0 0.0
    %531 = vmatprep.subr.mxu0 0.0
    %532 = vmatpush1.msra.mxu0 0.0
    %533 = vmatprep.subr.mxu0 0.0
    %534 = vmatpush1.msra.mxu0 0.0
    %535 = vmatprep.subr.mxu0 0.0
    %536 = vmatpush1.msra.mxu0 0.0
    %537 = vmatprep.subr.mxu0 0.0
    %538 = vmatpush1.msra.mxu0 0.0
    %539 = vmatprep.subr.mxu0 0.0
    %540 = vmatpush1.msra.mxu0 0.0
    %541 = vmatprep.subr.mxu0 0.0
    %542 = vmatpush1.msra.mxu0 0.0
    %543 = vmatprep.subr.mxu0 0.0
    %544 = vmatpush1.msra.mxu0 0.0
    %545 = vmatprep.subr.mxu0 0.0
    %546 = vmatpush1.msra.mxu0 0.0
    %547 = vmatprep.subr.mxu0 0.0
    %548 = vmatpush1.msra.mxu0 0.0
    %549 = vmatprep.subr.mxu0 0.0
    %550 = vmatpush1.msra.mxu0 0.0
    %551 = vmatprep.subr.mxu0 0.0
    %552 = vmatpush1.msra.mxu0 0.0
    %553 = vmatprep.mubr.f32.mxu0 0.0
    %554 = vmatmul.mubr.f32.gmra.mrb[0].mxu0 %v487
    %v555 = vpop.f32.mrb[0].mxu0
    %v556 = vadd.f32 0.0, %v555
    %v557 = vpop.f32.mrb[0].mxu0
    %558 = vdwg.mxu0
    %v560 = vrot.slane %v556, 2
    %v562 = vadd.f32 %v159, %v560
    %v563 = vxor.u32 %v562, 2147483648
    %v564 = vmul.f32 %v563, 1.442695
    %v565 = vpow.pop %v564
    %v566 = vadd.f32 %v565, 1.0
    %v567 = vrcp.pop %v566
    %v568 = vmul.f32 1.0, %v567
    %v569 = vtanh.pop %v562
    %v571 = vrot.slane %v476, 6
    %v573 = vmul.f32 %v568, %v571
    %575 = vrot.lane.b32.xlu0 %v569, 32
    %v576 = vpop.permute.xlu0 %575
    %v578 = vmul.f32 %v568, %v576
    %580 = vrot.lane.b32.xlu0 %v578, 32
    %v581 = vpop.permute.xlu0 %580
    %v583 = vadd.f32 %v573, %v581
    %v584 = vtanh.pop %v583
    %586 = vrot.lane.b32.xlu0 %v584, 32
    %v587 = vpop.permute.xlu0 %586
    %v589 = vmul.f32 %v568, %v587
    %v591 = vrot.slane %v589, 6
    %592 = vrot.lane.b32.xlu0 %v591, 64
    %v593 = vpop.permute.xlu0 %592
    %v594 = vsel %vm171, %v593, 0
    %596 = vmatprep.subr.mxu0 0.0
    %597 = vmatpush1.msra.mxu0 %v167
    %598 = vmatprep.subr.mxu0 0.0
    %599 = vmatpush1.msra.mxu0 %v168
    %600 = vmatprep.subr.mxu0 0.0
    %601 = vmatpush1.msra.mxu0 %v169
    %602 = vmatprep.subr.mxu0 0.0
    %603 = vmatpush1.msra.mxu0 %v170
    %604 = vmatprep.subr.mxu0 0.0
    %605 = vmatpush1.msra.mxu0 0.0
    %606 = vmatprep.subr.mxu0 0.0
    %607 = vmatpush1.msra.mxu0 0.0
    %608 = vmatprep.subr.mxu0 0.0
    %609 = vmatpush1.msra.mxu0 0.0
    %610 = vmatprep.subr.mxu0 0.0
    %611 = vmatpush1.msra.mxu0 0.0
    %612 = vmatprep.subr.mxu0 0.0
    %613 = vmatpush1.msra.mxu0 0.0
    %614 = vmatprep.subr.mxu0 0.0
    %615 = vmatpush1.msra.mxu0 0.0
    %616 = vmatprep.subr.mxu0 0.0
    %617 = vmatpush1.msra.mxu0 0.0
    %618 = vmatprep.subr.mxu0 0.0
    %619 = vmatpush1.msra.mxu0 0.0
    %620 = vmatprep.subr.mxu0 0.0
    %621 = vmatpush1.msra.mxu0 0.0
    %622 = vmatprep.subr.mxu0 0.0
    %623 = vmatpush1.msra.mxu0 0.0
    %624 = vmatprep.subr.mxu0 0.0
    %625 = vmatpush1.msra.mxu0 0.0
    %626 = vmatprep.subr.mxu0 0.0
    %627 = vmatpush1.msra.mxu0 0.0
    %628 = vmatprep.subr.mxu0 0.0
    %629 = vmatpush1.msra.mxu0 0.0
    %630 = vmatprep.subr.mxu0 0.0
    %631 = vmatpush1.msra.mxu0 0.0
    %632 = vmatprep.subr.mxu0 0.0
    %633 = vmatpush1.msra.mxu0 0.0
    %634 = vmatprep.subr.mxu0 0.0
    %635 = vmatpush1.msra.mxu0 0.0
    %636 = vmatprep.subr.mxu0 0.0
    %637 = vmatpush1.msra.mxu0 0.0
    %638 = vmatprep.subr.mxu0 0.0
    %639 = vmatpush1.msra.mxu0 0.0
    %640 = vmatprep.subr.mxu0 0.0
    %641 = vmatpush1.msra.mxu0 0.0
    %642 = vmatprep.subr.mxu0 0.0
    %643 = vmatpush1.msra.mxu0 0.0
    %644 = vmatprep.subr.mxu0 0.0
    %645 = vmatpush1.msra.mxu0 0.0
    %646 = vmatprep.subr.mxu0 0.0
    %647 = vmatpush1.msra.mxu0 0.0
    %648 = vmatprep.subr.mxu0 0.0
    %649 = vmatpush1.msra.mxu0 0.0
    %650 = vmatprep.subr.mxu0 0.0
    %651 = vmatpush1.msra.mxu0 0.0
    %652 = vmatprep.subr.mxu0 0.0
    %653 = vmatpush1.msra.mxu0 0.0
    %654 = vmatprep.subr.mxu0 0.0
    %655 = vmatpush1.msra.mxu0 0.0
    %656 = vmatprep.subr.mxu0 0.0
    %657 = vmatpush1.msra.mxu0 0.0
    %658 = vmatprep.subr.mxu0 0.0
    %659 = vmatpush1.msra.mxu0 0.0
    %660 = vmatprep.mubr.f32.mxu0 0.0
    %661 = vmatmul.mubr.f32.gmra.mrb[0].mxu0 %v594
    %v662 = vpop.f32.mrb[0].mxu0
    %v663 = vadd.f32 0.0, %v662
    %v664 = vpop.f32.mrb[0].mxu0
    %665 = vdwg.mxu0
    %v666 = vadd.f32 %v164, %v663
    %v667 = vxor.u32 %v666, 2147483648
    %v668 = vmul.f32 %v667, 1.442695
    %v669 = vpow.pop %v668
    %v670 = vadd.f32 %v669, 1.0
    %v671 = vrcp.pop %v670
    %v672 = vmul.f32 1.0, %v671
    %v673 = vtanh.pop %v666
    %v675 = vrot.slane %v583, 6
    %v677 = vmul.f32 %v672, %v675
    %679 = vrot.lane.b32.xlu0 %v673, 32
    %v680 = vpop.permute.xlu0 %679
    %v682 = vmul.f32 %v672, %v680
    %684 = vrot.lane.b32.xlu0 %v682, 32
    %v685 = vpop.permute.xlu0 %684
    %v687 = vadd.f32 %v677, %v685
    %v688 = vtanh.pop %v687
    %690 = vrot.lane.b32.xlu0 %v688, 32
    %v691 = vpop.permute.xlu0 %690
    %v693 = vmul.f32 %v672, %v691
    %695 = vrot.lane.b32.xlu0 %v693, 64
    %v696 = vpop.permute.xlu0 %695
    %v697 = vsel %vm171, %v696, 0
    %699 = vmatprep.subr.mxu0 0.0
    %700 = vmatpush1.msra.mxu0 %v167
    %701 = vmatprep.subr.mxu0 0.0
    %702 = vmatpush1.msra.mxu0 %v168
    %703 = vmatprep.subr.mxu0 0.0
    %704 = vmatpush1.msra.mxu0 %v169
    %705 = vmatprep.subr.mxu0 0.0
    %706 = vmatpush1.msra.mxu0 %v170
    %707 = vmatprep.subr.mxu0 0.0
    %708 = vmatpush1.msra.mxu0 0.0
    %709 = vmatprep.subr.mxu0 0.0
    %710 = vmatpush1.msra.mxu0 0.0
    %711 = vmatprep.subr.mxu0 0.0
    %712 = vmatpush1.msra.mxu0 0.0
    %713 = vmatprep.subr.mxu0 0.0
    %714 = vmatpush1.msra.mxu0 0.0
    %715 = vmatprep.subr.mxu0 0.0
    %716 = vmatpush1.msra.mxu0 0.0
    %717 = vmatprep.subr.mxu0 0.0
    %718 = vmatpush1.msra.mxu0 0.0
    %719 = vmatprep.subr.mxu0 0.0
    %720 = vmatpush1.msra.mxu0 0.0
    %721 = vmatprep.subr.mxu0 0.0
    %722 = vmatpush1.msra.mxu0 0.0
    %723 = vmatprep.subr.mxu0 0.0
    %724 = vmatpush1.msra.mxu0 0.0
    %725 = vmatprep.subr.mxu0 0.0
    %726 = vmatpush1.msra.mxu0 0.0
    %727 = vmatprep.subr.mxu0 0.0
    %728 = vmatpush1.msra.mxu0 0.0
    %729 = vmatprep.subr.mxu0 0.0
    %730 = vmatpush1.msra.mxu0 0.0
    %731 = vmatprep.subr.mxu0 0.0
    %732 = vmatpush1.msra.mxu0 0.0
    %733 = vmatprep.subr.mxu0 0.0
    %734 = vmatpush1.msra.mxu0 0.0
    %735 = vmatprep.subr.mxu0 0.0
    %736 = vmatpush1.msra.mxu0 0.0
    %737 = vmatprep.subr.mxu0 0.0
    %738 = vmatpush1.msra.mxu0 0.0
    %739 = vmatprep.subr.mxu0 0.0
    %740 = vmatpush1.msra.mxu0 0.0
    %741 = vmatprep.subr.mxu0 0.0
    %742 = vmatpush1.msra.mxu0 0.0
    %743 = vmatprep.subr.mxu0 0.0
    %744 = vmatpush1.msra.mxu0 0.0
    %745 = vmatprep.subr.mxu0 0.0
    %746 = vmatpush1.msra.mxu0 0.0
    %747 = vmatprep.subr.mxu0 0.0
    %748 = vmatpush1.msra.mxu0 0.0
    %749 = vmatprep.subr.mxu0 0.0
    %750 = vmatpush1.msra.mxu0 0.0
    %751 = vmatprep.subr.mxu0 0.0
    %752 = vmatpush1.msra.mxu0 0.0
    %753 = vmatprep.subr.mxu0 0.0
    %754 = vmatpush1.msra.mxu0 0.0
    %755 = vmatprep.subr.mxu0 0.0
    %756 = vmatpush1.msra.mxu0 0.0
    %757 = vmatprep.subr.mxu0 0.0
    %758 = vmatpush1.msra.mxu0 0.0
    %759 = vmatprep.subr.mxu0 0.0
    %760 = vmatpush1.msra.mxu0 0.0
    %761 = vmatprep.subr.mxu0 0.0
    %762 = vmatpush1.msra.mxu0 0.0
    %763 = vmatprep.mubr.f32.mxu0 0.0
    %764 = vmatmul.mubr.f32.gmra.mrb[0].mxu0 %v697
    %v765 = vpop.f32.mrb[0].mxu0
    %v766 = vadd.f32 0.0, %v765
    %v767 = vpop.f32.mrb[0].mxu0
    %768 = vdwg.mxu0
    %v770 = vrot.slane %v766, 6
    %v772 = vadd.f32 %v164, %v770
    %v773 = vxor.u32 %v772, 2147483648
    %v774 = vmul.f32 %v773, 1.442695
    %v775 = vpow.pop %v774
    %v776 = vadd.f32 %v775, 1.0
    %v777 = vrcp.pop %v776
    %v778 = vmul.f32 1.0, %v777
    %v779 = vtanh.pop %v772
    %v781 = vrot.slane %v687, 6
    %v783 = vmul.f32 %v778, %v781
    %785 = vrot.lane.b32.xlu0 %v779, 32
    %v786 = vpop.permute.xlu0 %785
    %v788 = vmul.f32 %v778, %v786
    %790 = vrot.lane.b32.xlu0 %v788, 32
    %v791 = vpop.permute.xlu0 %790
    %v793 = vadd.f32 %v783, %v791
    %v794 = vtanh.pop %v793
    %796 = vrot.lane.b32.xlu0 %v794, 32
    %v797 = vpop.permute.xlu0 %796
    %v799 = vmul.f32 %v778, %v797
    %v801 = vrot.slane %v799, 2
    %802 = vrot.lane.b32.xlu0 %v801, 64
    %v803 = vpop.permute.xlu0 %802
    %v804 = vsel %vm171, %v803, 0
    %806 = vmatprep.subr.mxu0 0.0
    %807 = vmatpush1.msra.mxu0 %v167
    %808 = vmatprep.subr.mxu0 0.0
    %809 = vmatpush1.msra.mxu0 %v168
    %810 = vmatprep.subr.mxu0 0.0
    %811 = vmatpush1.msra.mxu0 %v169
    %812 = vmatprep.subr.mxu0 0.0
    %813 = vmatpush1.msra.mxu0 %v170
    %814 = vmatprep.subr.mxu0 0.0
    %815 = vmatpush1.msra.mxu0 0.0
    %816 = vmatprep.subr.mxu0 0.0
    %817 = vmatpush1.msra.mxu0 0.0
    %818 = vmatprep.subr.mxu0 0.0
    %819 = vmatpush1.msra.mxu0 0.0
    %820 = vmatprep.subr.mxu0 0.0
    %821 = vmatpush1.msra.mxu0 0.0
    %822 = vmatprep.subr.mxu0 0.0
    %823 = vmatpush1.msra.mxu0 0.0
    %824 = vmatprep.subr.mxu0 0.0
    %825 = vmatpush1.msra.mxu0 0.0
    %826 = vmatprep.subr.mxu0 0.0
    %827 = vmatpush1.msra.mxu0 0.0
    %828 = vmatprep.subr.mxu0 0.0
    %829 = vmatpush1.msra.mxu0 0.0
    %830 = vmatprep.subr.mxu0 0.0
    %831 = vmatpush1.msra.mxu0 0.0
    %832 = vmatprep.subr.mxu0 0.0
    %833 = vmatpush1.msra.mxu0 0.0
    %834 = vmatprep.subr.mxu0 0.0
    %835 = vmatpush1.msra.mxu0 0.0
    %836 = vmatprep.subr.mxu0 0.0
    %837 = vmatpush1.msra.mxu0 0.0
    %838 = vmatprep.subr.mxu0 0.0
    %839 = vmatpush1.msra.mxu0 0.0
    %840 = vmatprep.subr.mxu0 0.0
    %841 = vmatpush1.msra.mxu0 0.0
    %842 = vmatprep.subr.mxu0 0.0
    %843 = vmatpush1.msra.mxu0 0.0
    %844 = vmatprep.subr.mxu0 0.0
    %845 = vmatpush1.msra.mxu0 0.0
    %846 = vmatprep.subr.mxu0 0.0
    %847 = vmatpush1.msra.mxu0 0.0
    %848 = vmatprep.subr.mxu0 0.0
    %849 = vmatpush1.msra.mxu0 0.0
    %850 = vmatprep.subr.mxu0 0.0
    %851 = vmatpush1.msra.mxu0 0.0
    %852 = vmatprep.subr.mxu0 0.0
    %853 = vmatpush1.msra.mxu0 0.0
    %854 = vmatprep.subr.mxu0 0.0
    %855 = vmatpush1.msra.mxu0 0.0
    %856 = vmatprep.subr.mxu0 0.0
    %857 = vmatpush1.msra.mxu0 0.0
    %858 = vmatprep.subr.mxu0 0.0
    %859 = vmatpush1.msra.mxu0 0.0
    %860 = vmatprep.subr.mxu0 0.0
    %861 = vmatpush1.msra.mxu0 0.0
    %862 = vmatprep.subr.mxu0 0.0
    %863 = vmatpush1.msra.mxu0 0.0
    %864 = vmatprep.subr.mxu0 0.0
    %865 = vmatpush1.msra.mxu0 0.0
    %866 = vmatprep.subr.mxu0 0.0
    %867 = vmatpush1.msra.mxu0 0.0
    %868 = vmatprep.subr.mxu0 0.0
    %869 = vmatpush1.msra.mxu0 0.0
    %870 = vmatprep.mubr.f32.mxu0 0.0
    %871 = vmatmul.mubr.f32.gmra.mrb[0].mxu0 %v804
    %v872 = vpop.f32.mrb[0].mxu0
    %v873 = vadd.f32 0.0, %v872
    %v874 = vpop.f32.mrb[0].mxu0
    %875 = vdwg.mxu0
    %v877 = vrot.slane %v873, 4
    %v879 = vadd.f32 %v164, %v877
    %v880 = vxor.u32 %v879, 2147483648
    %v881 = vmul.f32 %v880, 1.442695
    %v882 = vpow.pop %v881
    %v883 = vadd.f32 %v882, 1.0
    %v884 = vrcp.pop %v883
    %v885 = vmul.f32 1.0, %v884
    %v886 = vtanh.pop %v879
    %v888 = vrot.slane %v793, 6
    %v890 = vmul.f32 %v885, %v888
    %892 = vrot.lane.b32.xlu0 %v886, 32
    %v893 = vpop.permute.xlu0 %892
    %v895 = vmul.f32 %v885, %v893
    %897 = vrot.lane.b32.xlu0 %v895, 32
    %v898 = vpop.permute.xlu0 %897
    %v900 = vadd.f32 %v890, %v898
    %v901 = vtanh.pop %v900
    %903 = vrot.lane.b32.xlu0 %v901, 32
    %v904 = vpop.permute.xlu0 %903
    %v906 = vmul.f32 %v885, %v904
    %v908 = vrot.slane %v906, 4
    %909 = vrot.lane.b32.xlu0 %v908, 64
    %v910 = vpop.permute.xlu0 %909
    %v911 = vsel %vm171, %v910, 0
    %913 = vmatprep.subr.mxu0 0.0
    %914 = vmatpush1.msra.mxu0 %v167
    %915 = vmatprep.subr.mxu0 0.0
    %916 = vmatpush1.msra.mxu0 %v168
    %917 = vmatprep.subr.mxu0 0.0
    %918 = vmatpush1.msra.mxu0 %v169
    %919 = vmatprep.subr.mxu0 0.0
    %920 = vmatpush1.msra.mxu0 %v170
    %921 = vmatprep.subr.mxu0 0.0
    %922 = vmatpush1.msra.mxu0 0.0
    %923 = vmatprep.subr.mxu0 0.0
    %924 = vmatpush1.msra.mxu0 0.0
    %925 = vmatprep.subr.mxu0 0.0
    %926 = vmatpush1.msra.mxu0 0.0
    %927 = vmatprep.subr.mxu0 0.0
    %928 = vmatpush1.msra.mxu0 0.0
    %929 = vmatprep.subr.mxu0 0.0
    %930 = vmatpush1.msra.mxu0 0.0
    %931 = vmatprep.subr.mxu0 0.0
    %932 = vmatpush1.msra.mxu0 0.0
    %933 = vmatprep.subr.mxu0 0.0
    %934 = vmatpush1.msra.mxu0 0.0
    %935 = vmatprep.subr.mxu0 0.0
    %936 = vmatpush1.msra.mxu0 0.0
    %937 = vmatprep.subr.mxu0 0.0
    %938 = vmatpush1.msra.mxu0 0.0
    %939 = vmatprep.subr.mxu0 0.0
    %940 = vmatpush1.msra.mxu0 0.0
    %941 = vmatprep.subr.mxu0 0.0
    %942 = vmatpush1.msra.mxu0 0.0
    %943 = vmatprep.subr.mxu0 0.0
    %944 = vmatpush1.msra.mxu0 0.0
    %945 = vmatprep.subr.mxu0 0.0
    %946 = vmatpush1.msra.mxu0 0.0
    %947 = vmatprep.subr.mxu0 0.0
    %948 = vmatpush1.msra.mxu0 0.0
    %949 = vmatprep.subr.mxu0 0.0
    %950 = vmatpush1.msra.mxu0 0.0
    %951 = vmatprep.subr.mxu0 0.0
    %952 = vmatpush1.msra.mxu0 0.0
    %953 = vmatprep.subr.mxu0 0.0
    %954 = vmatpush1.msra.mxu0 0.0
    %955 = vmatprep.subr.mxu0 0.0
    %956 = vmatpush1.msra.mxu0 0.0
    %957 = vmatprep.subr.mxu0 0.0
    %958 = vmatpush1.msra.mxu0 0.0
    %959 = vmatprep.subr.mxu0 0.0
    %960 = vmatpush1.msra.mxu0 0.0
    %961 = vmatprep.subr.mxu0 0.0
    %962 = vmatpush1.msra.mxu0 0.0
    %963 = vmatprep.subr.mxu0 0.0
    %964 = vmatpush1.msra.mxu0 0.0
    %965 = vmatprep.subr.mxu0 0.0
    %966 = vmatpush1.msra.mxu0 0.0
    %967 = vmatprep.subr.mxu0 0.0
    %968 = vmatpush1.msra.mxu0 0.0
    %969 = vmatprep.subr.mxu0 0.0
    %970 = vmatpush1.msra.mxu0 0.0
    %971 = vmatprep.subr.mxu0 0.0
    %972 = vmatpush1.msra.mxu0 0.0
    %973 = vmatprep.subr.mxu0 0.0
    %974 = vmatpush1.msra.mxu0 0.0
    %975 = vmatprep.subr.mxu0 0.0
    %976 = vmatpush1.msra.mxu0 0.0
    %977 = vmatprep.mubr.f32.mxu0 0.0
    %978 = vmatmul.mubr.f32.gmra.mrb[0].mxu0 %v911
    %v979 = vpop.f32.mrb[0].mxu0
    %v980 = vadd.f32 0.0, %v979
    %v981 = vpop.f32.mrb[0].mxu0
    %982 = vdwg.mxu0
    %v984 = vrot.slane %v980, 2
    %v986 = vadd.f32 %v164, %v984
    %v987 = vxor.u32 %v986, 2147483648
    %v988 = vmul.f32 %v987, 1.442695
    %v989 = vpow.pop %v988
    %v990 = vadd.f32 %v989, 1.0
    %v991 = vrcp.pop %v990
    %v992 = vmul.f32 1.0, %v991
    %v993 = vtanh.pop %v986
    %v995 = vrot.slane %v900, 6
    %v997 = vmul.f32 %v992, %v995
    %999 = vrot.lane.b32.xlu0 %v993, 32
    %v1000 = vpop.permute.xlu0 %999
    %v1002 = vmul.f32 %v992, %v1000
    %1004 = vrot.lane.b32.xlu0 %v1002, 32
    %v1005 = vpop.permute.xlu0 %1004
    %v1007 = vadd.f32 %v997, %v1005
    %v1008 = vtanh.pop %v1007
    %1010 = vrot.lane.b32.xlu0 %v1008, 32
    %v1011 = vpop.permute.xlu0 %1010
    %v1013 = vmul.f32 %v992, %v1011
    %v1014 = vld [vmem:[#allocation7] sm:$0xff]
    %v1015 = vld [vmem:[#allocation7 + $0x8] sm:$0xff]
    %v1016 = vld [vmem:[#allocation7 + $0x10] sm:$0xff]
    %v1017 = vld [vmem:[#allocation7 + $0x18] sm:$0xff]
    %v1018 = vld [vmem:[%s6] sm:$0x1]
    %v1020 = vlaneseq
    %v1021 = vshrl.u32 %v1020, 7
    %v1022 = vsub.s32 0, %v1021
    %v1023 = vrot.slane %v1018, %v1022
    %v1026 = vrot.slane %v1013, 6
    %1027 = vrot.lane.b32.xlu0 %v1026, 64
    %v1028 = vpop.permute.xlu0 %1027
    %v1029 = vsel %vm171, %v1028, 0
    %1031 = vmatprep.subr.mxu0 0.0
    %1032 = vmatpush1.msra.mxu0 %v1014
    %1033 = vmatprep.subr.mxu0 0.0
    %1034 = vmatpush1.msra.mxu0 %v1015
    %1035 = vmatprep.subr.mxu0 0.0
    %1036 = vmatpush1.msra.mxu0 %v1016
    %1037 = vmatprep.subr.mxu0 0.0
    %1038 = vmatpush1.msra.mxu0 %v1017
    %1039 = vmatprep.subr.mxu0 0.0
    %1040 = vmatpush1.msra.mxu0 0.0
    %1041 = vmatprep.subr.mxu0 0.0
    %1042 = vmatpush1.msra.mxu0 0.0
    %1043 = vmatprep.subr.mxu0 0.0
    %1044 = vmatpush1.msra.mxu0 0.0
    %1045 = vmatprep.subr.mxu0 0.0
    %1046 = vmatpush1.msra.mxu0 0.0
    %1047 = vmatprep.subr.mxu0 0.0
    %1048 = vmatpush1.msra.mxu0 0.0
    %1049 = vmatprep.subr.mxu0 0.0
    %1050 = vmatpush1.msra.mxu0 0.0
    %1051 = vmatprep.subr.mxu0 0.0
    %1052 = vmatpush1.msra.mxu0 0.0
    %1053 = vmatprep.subr.mxu0 0.0
    %1054 = vmatpush1.msra.mxu0 0.0
    %1055 = vmatprep.subr.mxu0 0.0
    %1056 = vmatpush1.msra.mxu0 0.0
    %1057 = vmatprep.subr.mxu0 0.0
    %1058 = vmatpush1.msra.mxu0 0.0
    %1059 = vmatprep.subr.mxu0 0.0
    %1060 = vmatpush1.msra.mxu0 0.0
    %1061 = vmatprep.subr.mxu0 0.0
    %1062 = vmatpush1.msra.mxu0 0.0
    %1063 = vmatprep.subr.mxu0 0.0
    %1064 = vmatpush1.msra.mxu0 0.0
    %1065 = vmatprep.subr.mxu0 0.0
    %1066 = vmatpush1.msra.mxu0 0.0
    %1067 = vmatprep.subr.mxu0 0.0
    %1068 = vmatpush1.msra.mxu0 0.0
    %1069 = vmatprep.subr.mxu0 0.0
    %1070 = vmatpush1.msra.mxu0 0.0
    %1071 = vmatprep.subr.mxu0 0.0
    %1072 = vmatpush1.msra.mxu0 0.0
    %1073 = vmatprep.subr.mxu0 0.0
    %1074 = vmatpush1.msra.mxu0 0.0
    %1075 = vmatprep.subr.mxu0 0.0
    %1076 = vmatpush1.msra.mxu0 0.0
    %1077 = vmatprep.subr.mxu0 0.0
    %1078 = vmatpush1.msra.mxu0 0.0
    %1079 = vmatprep.subr.mxu0 0.0
    %1080 = vmatpush1.msra.mxu0 0.0
    %1081 = vmatprep.subr.mxu0 0.0
    %1082 = vmatpush1.msra.mxu0 0.0
    %1083 = vmatprep.subr.mxu0 0.0
    %1084 = vmatpush1.msra.mxu0 0.0
    %1085 = vmatprep.subr.mxu0 0.0
    %1086 = vmatpush1.msra.mxu0 0.0
    %1087 = vmatprep.subr.mxu0 0.0
    %1088 = vmatpush1.msra.mxu0 0.0
    %1089 = vmatprep.subr.mxu0 0.0
    %1090 = vmatpush1.msra.mxu0 0.0
    %1091 = vmatprep.subr.mxu0 0.0
    %1092 = vmatpush1.msra.mxu0 0.0
    %1093 = vmatprep.subr.mxu0 0.0
    %1094 = vmatpush1.msra.mxu0 0.0
    %1095 = vmatprep.mubr.f32.mxu0 0.0
    %1096 = vmatmul.mubr.f32.gmra.mrb[0].mxu0 %v1029
    %v1097 = vpop.f32.mrb[0].mxu0
    %v1098 = vadd.f32 %v1023, %v1097
    %v1099 = vpop.f32.mrb[0].mxu0
    %1100 = vdwg.mxu0
    %v1101 = vld [vmem:[%s5] sm:$0xff]
    %v1102 = vld [vmem:[%s5 + $0x8] sm:$0xff]
    %v1103 = vld [vmem:[%s5 + $0x10] sm:$0xff]
    %v1104 = vld [vmem:[%s5 + $0x18] sm:$0xff]
    %v1105 = vld [vmem:[%s7] sm:$0xff]
    %v1106 = vld [vmem:[%s7 + $0x8] sm:$0xff]
    %v1107 = vld [vmem:[%s7 + $0x10] sm:$0xff]
    %v1108 = vld [vmem:[%s7 + $0x18] sm:$0xff]
    %v1109 = vld [vmem:[%s8] sm:$0x1]
    %1110 = vmatprep.subr.mxu0 0.0
    %1111 = vmatpush1.msra.mxu0 %v1101
    %1112 = vmatprep.subr.mxu0 0.0
    %1113 = vmatpush1.msra.mxu0 %v1102
    %1114 = vmatprep.subr.mxu0 0.0
    %1115 = vmatpush1.msra.mxu0 %v1103
    %1116 = vmatprep.subr.mxu0 0.0
    %1117 = vmatpush1.msra.mxu0 %v1104
    %1118 = vmatprep.subr.mxu0 0.0
    %1119 = vmatpush1.msra.mxu0 0.0
    %1120 = vmatprep.subr.mxu0 0.0
    %1121 = vmatpush1.msra.mxu0 0.0
    %1122 = vmatprep.subr.mxu0 0.0
    %1123 = vmatpush1.msra.mxu0 0.0
    %1124 = vmatprep.subr.mxu0 0.0
    %1125 = vmatpush1.msra.mxu0 0.0
    %1126 = vmatprep.subr.mxu0 0.0
    %1127 = vmatpush1.msra.mxu0 0.0
    %1128 = vmatprep.subr.mxu0 0.0
    %1129 = vmatpush1.msra.mxu0 0.0
    %1130 = vmatprep.subr.mxu0 0.0
    %1131 = vmatpush1.msra.mxu0 0.0
    %1132 = vmatprep.subr.mxu0 0.0
    %1133 = vmatpush1.msra.mxu0 0.0
    %1134 = vmatprep.subr.mxu0 0.0
    %1135 = vmatpush1.msra.mxu0 0.0
    %1136 = vmatprep.subr.mxu0 0.0
    %1137 = vmatpush1.msra.mxu0 0.0
    %1138 = vmatprep.subr.mxu0 0.0
    %1139 = vmatpush1.msra.mxu0 0.0
    %1140 = vmatprep.subr.mxu0 0.0
    %1141 = vmatpush1.msra.mxu0 0.0
    %1142 = vmatprep.subr.mxu0 0.0
    %1143 = vmatpush1.msra.mxu0 0.0
    %1144 = vmatprep.subr.mxu0 0.0
    %1145 = vmatpush1.msra.mxu0 0.0
    %1146 = vmatprep.subr.mxu0 0.0
    %1147 = vmatpush1.msra.mxu0 0.0
    %1148 = vmatprep.subr.mxu0 0.0
    %1149 = vmatpush1.msra.mxu0 0.0
    %1150 = vmatprep.subr.mxu0 0.0
    %1151 = vmatpush1.msra.mxu0 0.0
    %1152 = vmatprep.subr.mxu0 0.0
    %1153 = vmatpush1.msra.mxu0 0.0
    %1154 = vmatprep.subr.mxu0 0.0
    %1155 = vmatpush1.msra.mxu0 0.0
    %1156 = vmatprep.subr.mxu0 0.0
    %1157 = vmatpush1.msra.mxu0 0.0
    %1158 = vmatprep.subr.mxu0 0.0
    %1159 = vmatpush1.msra.mxu0 0.0
    %1160 = vmatprep.subr.mxu0 0.0
    %1161 = vmatpush1.msra.mxu0 0.0
    %1162 = vmatprep.subr.mxu0 0.0
    %1163 = vmatpush1.msra.mxu0 0.0
    %1164 = vmatprep.subr.mxu0 0.0
    %1165 = vmatpush1.msra.mxu0 0.0
    %1166 = vmatprep.subr.mxu0 0.0
    %1167 = vmatpush1.msra.mxu0 0.0
    %1168 = vmatprep.subr.mxu0 0.0
    %1169 = vmatpush1.msra.mxu0 0.0
    %1170 = vmatprep.subr.mxu0 0.0
    %1171 = vmatpush1.msra.mxu0 0.0
    %1172 = vmatprep.subr.mxu0 0.0
    %1173 = vmatpush1.msra.mxu0 0.0
    %1174 = vmatprep.mubr.f32.mxu0 0.0
    %1175 = vmatmul.mubr.f32.gmra.mrb[0].mxu0 %v173
    %v1176 = vpop.f32.mrb[0].mxu0
    %v1177 = vadd.f32 0.0, %v1176
    %v1178 = vpop.f32.mrb[0].mxu0
    %1179 = vdwg.mxu0
    %v1180 = vadd.f32 %v1098, %v1177
    %v1181 = vxor.u32 %v1180, 2147483648
    %v1182 = vmul.f32 %v1181, 1.442695
    %v1183 = vpow.pop %v1182
    %v1184 = vadd.f32 %v1183, 1.0
    %v1185 = vrcp.pop %v1184
    %v1186 = vmul.f32 1.0, %v1185
    %v1187 = vtanh.pop %v1180
    %v1188 = vmul.f32 %v1186, 0.0
    %1190 = vrot.lane.b32.xlu0 %v1187, 32
    %v1191 = vpop.permute.xlu0 %1190
    %v1193 = vmul.f32 %v1186, %v1191
    %1195 = vrot.lane.b32.xlu0 %v1193, 32
    %v1196 = vpop.permute.xlu0 %1195
    %v1198 = vadd.f32 %v1188, %v1196
    %v1199 = vtanh.pop %v1198
    %1201 = vrot.lane.b32.xlu0 %v1199, 32
    %v1202 = vpop.permute.xlu0 %1201
    %v1204 = vmul.f32 %v1186, %v1202
    %v1206 = vlaneseq
    %v1207 = vshrl.u32 %v1206, 7
    %v1208 = vsub.s32 0, %v1207
    %v1209 = vrot.slane %v1109, %v1208
    %1212 = vrot.lane.b32.xlu0 %v1204, 64
    %v1213 = vpop.permute.xlu0 %1212
    %v1214 = vsel %vm171, %v1213, 0
    %1216 = vmatprep.subr.mxu0 0.0
    %1217 = vmatpush1.msra.mxu0 %v1105
    %1218 = vmatprep.subr.mxu0 0.0
    %1219 = vmatpush1.msra.mxu0 %v1106
    %1220 = vmatprep.subr.mxu0 0.0
    %1221 = vmatpush1.msra.mxu0 %v1107
    %1222 = vmatprep.subr.mxu0 0.0
    %1223 = vmatpush1.msra.mxu0 %v1108
    %1224 = vmatprep.subr.mxu0 0.0
    %1225 = vmatpush1.msra.mxu0 0.0
    %1226 = vmatprep.subr.mxu0 0.0
    %1227 = vmatpush1.msra.mxu0 0.0
    %1228 = vmatprep.subr.mxu0 0.0
    %1229 = vmatpush1.msra.mxu0 0.0
    %1230 = vmatprep.subr.mxu0 0.0
    %1231 = vmatpush1.msra.mxu0 0.0
    %1232 = vmatprep.subr.mxu0 0.0
    %1233 = vmatpush1.msra.mxu0 0.0
    %1234 = vmatprep.subr.mxu0 0.0
    %1235 = vmatpush1.msra.mxu0 0.0
    %1236 = vmatprep.subr.mxu0 0.0
    %1237 = vmatpush1.msra.mxu0 0.0
    %1238 = vmatprep.subr.mxu0 0.0
    %1239 = vmatpush1.msra.mxu0 0.0
    %1240 = vmatprep.subr.mxu0 0.0
    %1241 = vmatpush1.msra.mxu0 0.0
    %1242 = vmatprep.subr.mxu0 0.0
    %1243 = vmatpush1.msra.mxu0 0.0
    %1244 = vmatprep.subr.mxu0 0.0
    %1245 = vmatpush1.msra.mxu0 0.0
    %1246 = vmatprep.subr.mxu0 0.0
    %1247 = vmatpush1.msra.mxu0 0.0
    %1248 = vmatprep.subr.mxu0 0.0
    %1249 = vmatpush1.msra.mxu0 0.0
    %1250 = vmatprep.subr.mxu0 0.0
    %1251 = vmatpush1.msra.mxu0 0.0
    %1252 = vmatprep.subr.mxu0 0.0
    %1253 = vmatpush1.msra.mxu0 0.0
    %1254 = vmatprep.subr.mxu0 0.0
    %1255 = vmatpush1.msra.mxu0 0.0
    %1256 = vmatprep.subr.mxu0 0.0
    %1257 = vmatpush1.msra.mxu0 0.0
    %1258 = vmatprep.subr.mxu0 0.0
    %1259 = vmatpush1.msra.mxu0 0.0
    %1260 = vmatprep.subr.mxu0 0.0
    %1261 = vmatpush1.msra.mxu0 0.0
    %1262 = vmatprep.subr.mxu0 0.0
    %1263 = vmatpush1.msra.mxu0 0.0
    %1264 = vmatprep.subr.mxu0 0.0
    %1265 = vmatpush1.msra.mxu0 0.0
    %1266 = vmatprep.subr.mxu0 0.0
    %1267 = vmatpush1.msra.mxu0 0.0
    %1268 = vmatprep.subr.mxu0 0.0
    %1269 = vmatpush1.msra.mxu0 0.0
    %1270 = vmatprep.subr.mxu0 0.0
    %1271 = vmatpush1.msra.mxu0 0.0
    %1272 = vmatprep.subr.mxu0 0.0
    %1273 = vmatpush1.msra.mxu0 0.0
    %1274 = vmatprep.subr.mxu0 0.0
    %1275 = vmatpush1.msra.mxu0 0.0
    %1276 = vmatprep.subr.mxu0 0.0
    %1277 = vmatpush1.msra.mxu0 0.0
    %1278 = vmatprep.subr.mxu0 0.0
    %1279 = vmatpush1.msra.mxu0 0.0
    %1280 = vmatprep.mubr.f32.mxu0 0.0
    %1281 = vmatmul.mubr.f32.gmra.mrb[0].mxu0 %v1214
    %v1282 = vpop.f32.mrb[0].mxu0
    %v1283 = vadd.f32 %v1209, %v1282
    %v1284 = vpop.f32.mrb[0].mxu0
    %1285 = vdwg.mxu0
    %vm1286 = vcmask 123904
    %1287 = vst.msk [vmem:[#allocation8] sm:$0x3] %vm1286, %v1283
    %1288 = vmatprep.subr.mxu0 0.0
    %1289 = vmatpush1.msra.mxu0 %v1101
    %1290 = vmatprep.subr.mxu0 0.0
    %1291 = vmatpush1.msra.mxu0 %v1102
    %1292 = vmatprep.subr.mxu0 0.0
    %1293 = vmatpush1.msra.mxu0 %v1103
    %1294 = vmatprep.subr.mxu0 0.0
    %1295 = vmatpush1.msra.mxu0 %v1104
    %1296 = vmatprep.subr.mxu0 0.0
    %1297 = vmatpush1.msra.mxu0 0.0
    %1298 = vmatprep.subr.mxu0 0.0
    %1299 = vmatpush1.msra.mxu0 0.0
    %1300 = vmatprep.subr.mxu0 0.0
    %1301 = vmatpush1.msra.mxu0 0.0
    %1302 = vmatprep.subr.mxu0 0.0
    %1303 = vmatpush1.msra.mxu0 0.0
    %1304 = vmatprep.subr.mxu0 0.0
    %1305 = vmatpush1.msra.mxu0 0.0
    %1306 = vmatprep.subr.mxu0 0.0
    %1307 = vmatpush1.msra.mxu0 0.0
    %1308 = vmatprep.subr.mxu0 0.0
    %1309 = vmatpush1.msra.mxu0 0.0
    %1310 = vmatprep.subr.mxu0 0.0
    %1311 = vmatpush1.msra.mxu0 0.0
    %1312 = vmatprep.subr.mxu0 0.0
    %1313 = vmatpush1.msra.mxu0 0.0
    %1314 = vmatprep.subr.mxu0 0.0
    %1315 = vmatpush1.msra.mxu0 0.0
    %1316 = vmatprep.subr.mxu0 0.0
    %1317 = vmatpush1.msra.mxu0 0.0
    %1318 = vmatprep.subr.mxu0 0.0
    %1319 = vmatpush1.msra.mxu0 0.0
    %1320 = vmatprep.subr.mxu0 0.0
    %1321 = vmatpush1.msra.mxu0 0.0
    %1322 = vmatprep.subr.mxu0 0.0
    %1323 = vmatpush1.msra.mxu0 0.0
    %1324 = vmatprep.subr.mxu0 0.0
    %1325 = vmatpush1.msra.mxu0 0.0
    %1326 = vmatprep.subr.mxu0 0.0
    %1327 = vmatpush1.msra.mxu0 0.0
    %1328 = vmatprep.subr.mxu0 0.0
    %1329 = vmatpush1.msra.mxu0 0.0
    %1330 = vmatprep.subr.mxu0 0.0
    %1331 = vmatpush1.msra.mxu0 0.0
    %1332 = vmatprep.subr.mxu0 0.0
    %1333 = vmatpush1.msra.mxu0 0.0
    %1334 = vmatprep.subr.mxu0 0.0
    %1335 = vmatpush1.msra.mxu0 0.0
    %1336 = vmatprep.subr.mxu0 0.0
    %1337 = vmatpush1.msra.mxu0 0.0
    %1338 = vmatprep.subr.mxu0 0.0
    %1339 = vmatpush1.msra.mxu0 0.0
    %1340 = vmatprep.subr.mxu0 0.0
    %1341 = vmatpush1.msra.mxu0 0.0
    %1342 = vmatprep.subr.mxu0 0.0
    %1343 = vmatpush1.msra.mxu0 0.0
    %1344 = vmatprep.subr.mxu0 0.0
    %1345 = vmatpush1.msra.mxu0 0.0
    %1346 = vmatprep.subr.mxu0 0.0
    %1347 = vmatpush1.msra.mxu0 0.0
    %1348 = vmatprep.subr.mxu0 0.0
    %1349 = vmatpush1.msra.mxu0 0.0
    %1350 = vmatprep.subr.mxu0 0.0
    %1351 = vmatpush1.msra.mxu0 0.0
    %1352 = vmatprep.mubr.f32.mxu0 0.0
    %1353 = vmatmul.mubr.f32.gmra.mrb[0].mxu0 %v1214
    %v1354 = vpop.f32.mrb[0].mxu0
    %v1355 = vadd.f32 0.0, %v1354
    %v1356 = vpop.f32.mrb[0].mxu0
    %1357 = vdwg.mxu0
    %v1358 = vadd.f32 %v1098, %v1355
    %v1359 = vxor.u32 %v1358, 2147483648
    %v1360 = vmul.f32 %v1359, 1.442695
    %v1361 = vpow.pop %v1360
    %v1362 = vadd.f32 %v1361, 1.0
    %v1363 = vrcp.pop %v1362
    %v1364 = vmul.f32 1.0, %v1363
    %v1365 = vtanh.pop %v1358
    %v1366 = vmul.f32 %v1364, %v1198
    %1368 = vrot.lane.b32.xlu0 %v1365, 32
    %v1369 = vpop.permute.xlu0 %1368
    %v1371 = vmul.f32 %v1364, %v1369
    %1373 = vrot.lane.b32.xlu0 %v1371, 32
    %v1374 = vpop.permute.xlu0 %1373
    %v1376 = vadd.f32 %v1366, %v1374
    %v1377 = vtanh.pop %v1376
    %1379 = vrot.lane.b32.xlu0 %v1377, 32
    %v1380 = vpop.permute.xlu0 %1379
    %v1382 = vmul.f32 %v1364, %v1380
    %1384 = vrot.lane.b32.xlu0 %v1382, 64
    %v1385 = vpop.permute.xlu0 %1384
    %v1386 = vsel %vm171, %v1385, 0
    %1388 = vmatprep.subr.mxu0 0.0
    %1389 = vmatpush1.msra.mxu0 %v1105
    %1390 = vmatprep.subr.mxu0 0.0
    %1391 = vmatpush1.msra.mxu0 %v1106
    %1392 = vmatprep.subr.mxu0 0.0
    %1393 = vmatpush1.msra.mxu0 %v1107
    %1394 = vmatprep.subr.mxu0 0.0
    %1395 = vmatpush1.msra.mxu0 %v1108
    %1396 = vmatprep.subr.mxu0 0.0
    %1397 = vmatpush1.msra.mxu0 0.0
    %1398 = vmatprep.subr.mxu0 0.0
    %1399 = vmatpush1.msra.mxu0 0.0
    %1400 = vmatprep.subr.mxu0 0.0
    %1401 = vmatpush1.msra.mxu0 0.0
    %1402 = vmatprep.subr.mxu0 0.0
    %1403 = vmatpush1.msra.mxu0 0.0
    %1404 = vmatprep.subr.mxu0 0.0
    %1405 = vmatpush1.msra.mxu0 0.0
    %1406 = vmatprep.subr.mxu0 0.0
    %1407 = vmatpush1.msra.mxu0 0.0
    %1408 = vmatprep.subr.mxu0 0.0
    %1409 = vmatpush1.msra.mxu0 0.0
    %1410 = vmatprep.subr.mxu0 0.0
    %1411 = vmatpush1.msra.mxu0 0.0
    %1412 = vmatprep.subr.mxu0 0.0
    %1413 = vmatpush1.msra.mxu0 0.0
    %1414 = vmatprep.subr.mxu0 0.0
    %1415 = vmatpush1.msra.mxu0 0.0
    %1416 = vmatprep.subr.mxu0 0.0
    %1417 = vmatpush1.msra.mxu0 0.0
    %1418 = vmatprep.subr.mxu0 0.0
    %1419 = vmatpush1.msra.mxu0 0.0
    %1420 = vmatprep.subr.mxu0 0.0
    %1421 = vmatpush1.msra.mxu0 0.0
    %1422 = vmatprep.subr.mxu0 0.0
    %1423 = vmatpush1.msra.mxu0 0.0
    %1424 = vmatprep.subr.mxu0 0.0
    %1425 = vmatpush1.msra.mxu0 0.0
    %1426 = vmatprep.subr.mxu0 0.0
    %1427 = vmatpush1.msra.mxu0 0.0
    %1428 = vmatprep.subr.mxu0 0.0
    %1429 = vmatpush1.msra.mxu0 0.0
    %1430 = vmatprep.subr.mxu0 0.0
    %1431 = vmatpush1.msra.mxu0 0.0
    %1432 = vmatprep.subr.mxu0 0.0
    %1433 = vmatpush1.msra.mxu0 0.0
    %1434 = vmatprep.subr.mxu0 0.0
    %1435 = vmatpush1.msra.mxu0 0.0
    %1436 = vmatprep.subr.mxu0 0.0
    %1437 = vmatpush1.msra.mxu0 0.0
    %1438 = vmatprep.subr.mxu0 0.0
    %1439 = vmatpush1.msra.mxu0 0.0
    %1440 = vmatprep.subr.mxu0 0.0
    %1441 = vmatpush1.msra.mxu0 0.0
    %1442 = vmatprep.subr.mxu0 0.0
    %1443 = vmatpush1.msra.mxu0 0.0
    %1444 = vmatprep.subr.mxu0 0.0
    %1445 = vmatpush1.msra.mxu0 0.0
    %1446 = vmatprep.subr.mxu0 0.0
    %1447 = vmatpush1.msra.mxu0 0.0
    %1448 = vmatprep.subr.mxu0 0.0
    %1449 = vmatpush1.msra.mxu0 0.0
    %1450 = vmatprep.subr.mxu0 0.0
    %1451 = vmatpush1.msra.mxu0 0.0
    %1452 = vmatprep.mubr.f32.mxu0 0.0
    %1453 = vmatmul.mubr.f32.gmra.mrb[0].mxu0 %v1386
    %v1454 = vpop.f32.mrb[0].mxu0
    %v1455 = vadd.f32 %v1209, %v1454
    %v1456 = vpop.f32.mrb[0].mxu0
    %1457 = vdwg.mxu0
    %1459 = vrot.lane.b32.xlu0 %v1455, 16
    %v1460 = vpop.permute.xlu0 %1459
    %vm1462 = vcmask 255104
    %1463 = vst.msk [vmem:[#allocation8] sm:$0x3] %vm1462, %v1460
    %1464 = vmatprep.subr.mxu0 0.0
    %1465 = vmatpush1.msra.mxu0 %v1101
    %1466 = vmatprep.subr.mxu0 0.0
    %1467 = vmatpush1.msra.mxu0 %v1102
    %1468 = vmatprep.subr.mxu0 0.0
    %1469 = vmatpush1.msra.mxu0 %v1103
    %1470 = vmatprep.subr.mxu0 0.0
    %1471 = vmatpush1.msra.mxu0 %v1104
    %1472 = vmatprep.subr.mxu0 0.0
    %1473 = vmatpush1.msra.mxu0 0.0
    %1474 = vmatprep.subr.mxu0 0.0
    %1475 = vmatpush1.msra.mxu0 0.0
    %1476 = vmatprep.subr.mxu0 0.0
    %1477 = vmatpush1.msra.mxu0 0.0
    %1478 = vmatprep.subr.mxu0 0.0
    %1479 = vmatpush1.msra.mxu0 0.0
    %1480 = vmatprep.subr.mxu0 0.0
    %1481 = vmatpush1.msra.mxu0 0.0
    %1482 = vmatprep.subr.mxu0 0.0
    %1483 = vmatpush1.msra.mxu0 0.0
    %1484 = vmatprep.subr.mxu0 0.0
    %1485 = vmatpush1.msra.mxu0 0.0
    %1486 = vmatprep.subr.mxu0 0.0
    %1487 = vmatpush1.msra.mxu0 0.0
    %1488 = vmatprep.subr.mxu0 0.0
    %1489 = vmatpush1.msra.mxu0 0.0
    %1490 = vmatprep.subr.mxu0 0.0
    %1491 = vmatpush1.msra.mxu0 0.0
    %1492 = vmatprep.subr.mxu0 0.0
    %1493 = vmatpush1.msra.mxu0 0.0
    %1494 = vmatprep.subr.mxu0 0.0
    %1495 = vmatpush1.msra.mxu0 0.0
    %1496 = vmatprep.subr.mxu0 0.0
    %1497 = vmatpush1.msra.mxu0 0.0
    %1498 = vmatprep.subr.mxu0 0.0
    %1499 = vmatpush1.msra.mxu0 0.0
    %1500 = vmatprep.subr.mxu0 0.0
    %1501 = vmatpush1.msra.mxu0 0.0
    %1502 = vmatprep.subr.mxu0 0.0
    %1503 = vmatpush1.msra.mxu0 0.0
    %1504 = vmatprep.subr.mxu0 0.0
    %1505 = vmatpush1.msra.mxu0 0.0
    %1506 = vmatprep.subr.mxu0 0.0
    %1507 = vmatpush1.msra.mxu0 0.0
    %1508 = vmatprep.subr.mxu0 0.0
    %1509 = vmatpush1.msra.mxu0 0.0
    %1510 = vmatprep.subr.mxu0 0.0
    %1511 = vmatpush1.msra.mxu0 0.0
    %1512 = vmatprep.subr.mxu0 0.0
    %1513 = vmatpush1.msra.mxu0 0.0
    %1514 = vmatprep.subr.mxu0 0.0
    %1515 = vmatpush1.msra.mxu0 0.0
    %1516 = vmatprep.subr.mxu0 0.0
    %1517 = vmatpush1.msra.mxu0 0.0
    %1518 = vmatprep.subr.mxu0 0.0
    %1519 = vmatpush1.msra.mxu0 0.0
    %1520 = vmatprep.subr.mxu0 0.0
    %1521 = vmatpush1.msra.mxu0 0.0
    %1522 = vmatprep.subr.mxu0 0.0
    %1523 = vmatpush1.msra.mxu0 0.0
    %1524 = vmatprep.subr.mxu0 0.0
    %1525 = vmatpush1.msra.mxu0 0.0
    %1526 = vmatprep.subr.mxu0 0.0
    %1527 = vmatpush1.msra.mxu0 0.0
    %1528 = vmatprep.mubr.f32.mxu0 0.0
    %1529 = vmatmul.mubr.f32.gmra.mrb[0].mxu0 %v1386
    %v1530 = vpop.f32.mrb[0].mxu0
    %v1531 = vadd.f32 0.0, %v1530
    %v1532 = vpop.f32.mrb[0].mxu0
    %1533 = vdwg.mxu0
    %v1534 = vadd.f32 %v1098, %v1531
    %v1535 = vxor.u32 %v1534, 2147483648
    %v1536 = vmul.f32 %v1535, 1.442695
    %v1537 = vpow.pop %v1536
    %v1538 = vadd.f32 %v1537, 1.0
    %v1539 = vrcp.pop %v1538
    %v1540 = vmul.f32 1.0, %v1539
    %v1541 = vtanh.pop %v1534
    %v1542 = vmul.f32 %v1540, %v1376
    %1544 = vrot.lane.b32.xlu0 %v1541, 32
    %v1545 = vpop.permute.xlu0 %1544
    %v1547 = vmul.f32 %v1540, %v1545
    %1549 = vrot.lane.b32.xlu0 %v1547, 32
    %v1550 = vpop.permute.xlu0 %1549
    %v1552 = vadd.f32 %v1542, %v1550
    %v1553 = vtanh.pop %v1552
    %1555 = vrot.lane.b32.xlu0 %v1553, 32
    %v1556 = vpop.permute.xlu0 %1555
    %v1558 = vmul.f32 %v1540, %v1556
    %1560 = vrot.lane.b32.xlu0 %v1558, 64
    %v1561 = vpop.permute.xlu0 %1560
    %v1562 = vsel %vm171, %v1561, 0
    %1564 = vmatprep.subr.mxu0 0.0
    %1565 = vmatpush1.msra.mxu0 %v1105
    %1566 = vmatprep.subr.mxu0 0.0
    %1567 = vmatpush1.msra.mxu0 %v1106
    %1568 = vmatprep.subr.mxu0 0.0
    %1569 = vmatpush1.msra.mxu0 %v1107
    %1570 = vmatprep.subr.mxu0 0.0
    %1571 = vmatpush1.msra.mxu0 %v1108
    %1572 = vmatprep.subr.mxu0 0.0
    %1573 = vmatpush1.msra.mxu0 0.0
    %1574 = vmatprep.subr.mxu0 0.0
    %1575 = vmatpush1.msra.mxu0 0.0
    %1576 = vmatprep.subr.mxu0 0.0
    %1577 = vmatpush1.msra.mxu0 0.0
    %1578 = vmatprep.subr.mxu0 0.0
    %1579 = vmatpush1.msra.mxu0 0.0
    %1580 = vmatprep.subr.mxu0 0.0
    %1581 = vmatpush1.msra.mxu0 0.0
    %1582 = vmatprep.subr.mxu0 0.0
    %1583 = vmatpush1.msra.mxu0 0.0
    %1584 = vmatprep.subr.mxu0 0.0
    %1585 = vmatpush1.msra.mxu0 0.0
    %1586 = vmatprep.subr.mxu0 0.0
    %1587 = vmatpush1.msra.mxu0 0.0
    %1588 = vmatprep.subr.mxu0 0.0
    %1589 = vmatpush1.msra.mxu0 0.0
    %1590 = vmatprep.subr.mxu0 0.0
    %1591 = vmatpush1.msra.mxu0 0.0
    %1592 = vmatprep.subr.mxu0 0.0
    %1593 = vmatpush1.msra.mxu0 0.0
    %1594 = vmatprep.subr.mxu0 0.0
    %1595 = vmatpush1.msra.mxu0 0.0
    %1596 = vmatprep.subr.mxu0 0.0
    %1597 = vmatpush1.msra.mxu0 0.0
    %1598 = vmatprep.subr.mxu0 0.0
    %1599 = vmatpush1.msra.mxu0 0.0
    %1600 = vmatprep.subr.mxu0 0.0
    %1601 = vmatpush1.msra.mxu0 0.0
    %1602 = vmatprep.subr.mxu0 0.0
    %1603 = vmatpush1.msra.mxu0 0.0
    %1604 = vmatprep.subr.mxu0 0.0
    %1605 = vmatpush1.msra.mxu0 0.0
    %1606 = vmatprep.subr.mxu0 0.0
    %1607 = vmatpush1.msra.mxu0 0.0
    %1608 = vmatprep.subr.mxu0 0.0
    %1609 = vmatpush1.msra.mxu0 0.0
    %1610 = vmatprep.subr.mxu0 0.0
    %1611 = vmatpush1.msra.mxu0 0.0
    %1612 = vmatprep.subr.mxu0 0.0
    %1613 = vmatpush1.msra.mxu0 0.0
    %1614 = vmatprep.subr.mxu0 0.0
    %1615 = vmatpush1.msra.mxu0 0.0
    %1616 = vmatprep.subr.mxu0 0.0
    %1617 = vmatpush1.msra.mxu0 0.0
    %1618 = vmatprep.subr.mxu0 0.0
    %1619 = vmatpush1.msra.mxu0 0.0
    %1620 = vmatprep.subr.mxu0 0.0
    %1621 = vmatpush1.msra.mxu0 0.0
    %1622 = vmatprep.subr.mxu0 0.0
    %1623 = vmatpush1.msra.mxu0 0.0
    %1624 = vmatprep.subr.mxu0 0.0
    %1625 = vmatpush1.msra.mxu0 0.0
    %1626 = vmatprep.subr.mxu0 0.0
    %1627 = vmatpush1.msra.mxu0 0.0
    %1628 = vmatprep.mubr.f32.mxu0 0.0
    %1629 = vmatmul.mubr.f32.gmra.mrb[0].mxu0 %v1562
    %v1630 = vpop.f32.mrb[0].mxu0
    %v1631 = vadd.f32 %v1209, %v1630
    %v1632 = vpop.f32.mrb[0].mxu0
    %1633 = vdwg.mxu0
    %1635 = vrot.lane.b32.xlu0 %v1631, 32
    %v1636 = vpop.permute.xlu0 %1635
    %vm1638 = vcmask 386304
    %1639 = vst.msk [vmem:[#allocation8] sm:$0x3] %vm1638, %v1636
    %1640 = vmatprep.subr.mxu0 0.0
    %1641 = vmatpush1.msra.mxu0 %v1101
    %1642 = vmatprep.subr.mxu0 0.0
    %1643 = vmatpush1.msra.mxu0 %v1102
    %1644 = vmatprep.subr.mxu0 0.0
    %1645 = vmatpush1.msra.mxu0 %v1103
    %1646 = vmatprep.subr.mxu0 0.0
    %1647 = vmatpush1.msra.mxu0 %v1104
    %1648 = vmatprep.subr.mxu0 0.0
    %1649 = vmatpush1.msra.mxu0 0.0
    %1650 = vmatprep.subr.mxu0 0.0
    %1651 = vmatpush1.msra.mxu0 0.0
    %1652 = vmatprep.subr.mxu0 0.0
    %1653 = vmatpush1.msra.mxu0 0.0
    %1654 = vmatprep.subr.mxu0 0.0
    %1655 = vmatpush1.msra.mxu0 0.0
    %1656 = vmatprep.subr.mxu0 0.0
    %1657 = vmatpush1.msra.mxu0 0.0
    %1658 = vmatprep.subr.mxu0 0.0
    %1659 = vmatpush1.msra.mxu0 0.0
    %1660 = vmatprep.subr.mxu0 0.0
    %1661 = vmatpush1.msra.mxu0 0.0
    %1662 = vmatprep.subr.mxu0 0.0
    %1663 = vmatpush1.msra.mxu0 0.0
    %1664 = vmatprep.subr.mxu0 0.0
    %1665 = vmatpush1.msra.mxu0 0.0
    %1666 = vmatprep.subr.mxu0 0.0
    %1667 = vmatpush1.msra.mxu0 0.0
    %1668 = vmatprep.subr.mxu0 0.0
    %1669 = vmatpush1.msra.mxu0 0.0
    %1670 = vmatprep.subr.mxu0 0.0
    %1671 = vmatpush1.msra.mxu0 0.0
    %1672 = vmatprep.subr.mxu0 0.0
    %1673 = vmatpush1.msra.mxu0 0.0
    %1674 = vmatprep.subr.mxu0 0.0
    %1675 = vmatpush1.msra.mxu0 0.0
    %1676 = vmatprep.subr.mxu0 0.0
    %1677 = vmatpush1.msra.mxu0 0.0
    %1678 = vmatprep.subr.mxu0 0.0
    %1679 = vmatpush1.msra.mxu0 0.0
    %1680 = vmatprep.subr.mxu0 0.0
    %1681 = vmatpush1.msra.mxu0 0.0
    %1682 = vmatprep.subr.mxu0 0.0
    %1683 = vmatpush1.msra.mxu0 0.0
    %1684 = vmatprep.subr.mxu0 0.0
    %1685 = vmatpush1.msra.mxu0 0.0
    %1686 = vmatprep.subr.mxu0 0.0
    %1687 = vmatpush1.msra.mxu0 0.0
    %1688 = vmatprep.subr.mxu0 0.0
    %1689 = vmatpush1.msra.mxu0 0.0
    %1690 = vmatprep.subr.mxu0 0.0
    %1691 = vmatpush1.msra.mxu0 0.0
    %1692 = vmatprep.subr.mxu0 0.0
    %1693 = vmatpush1.msra.mxu0 0.0
    %1694 = vmatprep.subr.mxu0 0.0
    %1695 = vmatpush1.msra.mxu0 0.0
    %1696 = vmatprep.subr.mxu0 0.0
    %1697 = vmatpush1.msra.mxu0 0.0
    %1698 = vmatprep.subr.mxu0 0.0
    %1699 = vmatpush1.msra.mxu0 0.0
    %1700 = vmatprep.subr.mxu0 0.0
    %1701 = vmatpush1.msra.mxu0 0.0
    %1702 = vmatprep.subr.mxu0 0.0
    %1703 = vmatpush1.msra.mxu0 0.0
    %1704 = vmatprep.mubr.f32.mxu0 0.0
    %1705 = vmatmul.mubr.f32.gmra.mrb[0].mxu0 %v1562
    %v1706 = vpop.f32.mrb[0].mxu0
    %v1707 = vadd.f32 0.0, %v1706
    %v1708 = vpop.f32.mrb[0].mxu0
    %1709 = vdwg.mxu0
    %v1710 = vadd.f32 %v1098, %v1707
    %v1711 = vxor.u32 %v1710, 2147483648
    %v1712 = vmul.f32 %v1711, 1.442695
    %v1713 = vpow.pop %v1712
    %v1714 = vadd.f32 %v1713, 1.0
    %v1715 = vrcp.pop %v1714
    %v1716 = vmul.f32 1.0, %v1715
    %v1717 = vtanh.pop %v1710
    %v1718 = vmul.f32 %v1716, %v1552
    %1720 = vrot.lane.b32.xlu0 %v1717, 32
    %v1721 = vpop.permute.xlu0 %1720
    %v1723 = vmul.f32 %v1716, %v1721
    %1725 = vrot.lane.b32.xlu0 %v1723, 32
    %v1726 = vpop.permute.xlu0 %1725
    %v1728 = vadd.f32 %v1718, %v1726
    %v1729 = vtanh.pop %v1728
    %1731 = vrot.lane.b32.xlu0 %v1729, 32
    %v1732 = vpop.permute.xlu0 %1731
    %v1734 = vmul.f32 %v1716, %v1732
    %1736 = vrot.lane.b32.xlu0 %v1734, 64
    %v1737 = vpop.permute.xlu0 %1736
    %v1738 = vsel %vm171, %v1737, 0
    %1740 = vmatprep.subr.mxu0 0.0
    %1741 = vmatpush1.msra.mxu0 %v1105
    %1742 = vmatprep.subr.mxu0 0.0
    %1743 = vmatpush1.msra.mxu0 %v1106
    %1744 = vmatprep.subr.mxu0 0.0
    %1745 = vmatpush1.msra.mxu0 %v1107
    %1746 = vmatprep.subr.mxu0 0.0
    %1747 = vmatpush1.msra.mxu0 %v1108
    %1748 = vmatprep.subr.mxu0 0.0
    %1749 = vmatpush1.msra.mxu0 0.0
    %1750 = vmatprep.subr.mxu0 0.0
    %1751 = vmatpush1.msra.mxu0 0.0
    %1752 = vmatprep.subr.mxu0 0.0
    %1753 = vmatpush1.msra.mxu0 0.0
    %1754 = vmatprep.subr.mxu0 0.0
    %1755 = vmatpush1.msra.mxu0 0.0
    %1756 = vmatprep.subr.mxu0 0.0
    %1757 = vmatpush1.msra.mxu0 0.0
    %1758 = vmatprep.subr.mxu0 0.0
    %1759 = vmatpush1.msra.mxu0 0.0
    %1760 = vmatprep.subr.mxu0 0.0
    %1761 = vmatpush1.msra.mxu0 0.0
    %1762 = vmatprep.subr.mxu0 0.0
    %1763 = vmatpush1.msra.mxu0 0.0
    %1764 = vmatprep.subr.mxu0 0.0
    %1765 = vmatpush1.msra.mxu0 0.0
    %1766 = vmatprep.subr.mxu0 0.0
    %1767 = vmatpush1.msra.mxu0 0.0
    %1768 = vmatprep.subr.mxu0 0.0
    %1769 = vmatpush1.msra.mxu0 0.0
    %1770 = vmatprep.subr.mxu0 0.0
    %1771 = vmatpush1.msra.mxu0 0.0
    %1772 = vmatprep.subr.mxu0 0.0
    %1773 = vmatpush1.msra.mxu0 0.0
    %1774 = vmatprep.subr.mxu0 0.0
    %1775 = vmatpush1.msra.mxu0 0.0
    %1776 = vmatprep.subr.mxu0 0.0
    %1777 = vmatpush1.msra.mxu0 0.0
    %1778 = vmatprep.subr.mxu0 0.0
    %1779 = vmatpush1.msra.mxu0 0.0
    %1780 = vmatprep.subr.mxu0 0.0
    %1781 = vmatpush1.msra.mxu0 0.0
    %1782 = vmatprep.subr.mxu0 0.0
    %1783 = vmatpush1.msra.mxu0 0.0
    %1784 = vmatprep.subr.mxu0 0.0
    %1785 = vmatpush1.msra.mxu0 0.0
    %1786 = vmatprep.subr.mxu0 0.0
    %1787 = vmatpush1.msra.mxu0 0.0
    %1788 = vmatprep.subr.mxu0 0.0
    %1789 = vmatpush1.msra.mxu0 0.0
    %1790 = vmatprep.subr.mxu0 0.0
    %1791 = vmatpush1.msra.mxu0 0.0
    %1792 = vmatprep.subr.mxu0 0.0
    %1793 = vmatpush1.msra.mxu0 0.0
    %1794 = vmatprep.subr.mxu0 0.0
    %1795 = vmatpush1.msra.mxu0 0.0
    %1796 = vmatprep.subr.mxu0 0.0
    %1797 = vmatpush1.msra.mxu0 0.0
    %1798 = vmatprep.subr.mxu0 0.0
    %1799 = vmatpush1.msra.mxu0 0.0
    %1800 = vmatprep.subr.mxu0 0.0
    %1801 = vmatpush1.msra.mxu0 0.0
    %1802 = vmatprep.subr.mxu0 0.0
    %1803 = vmatpush1.msra.mxu0 0.0
    %1804 = vmatprep.mubr.f32.mxu0 0.0
    %1805 = vmatmul.mubr.f32.gmra.mrb[0].mxu0 %v1738
    %v1806 = vpop.f32.mrb[0].mxu0
    %v1807 = vadd.f32 %v1209, %v1806
    %v1808 = vpop.f32.mrb[0].mxu0
    %1809 = vdwg.mxu0
    %1811 = vrot.lane.b32.xlu0 %v1807, 48
    %v1812 = vpop.permute.xlu0 %1811
    %vm1814 = vcmask 517504
    %1815 = vst.msk [vmem:[#allocation8] sm:$0x3] %vm1814, %v1812
    %1816 = vmatprep.subr.mxu0 0.0
    %1817 = vmatpush1.msra.mxu0 %v1101
    %1818 = vmatprep.subr.mxu0 0.0
    %1819 = vmatpush1.msra.mxu0 %v1102
    %1820 = vmatprep.subr.mxu0 0.0
    %1821 = vmatpush1.msra.mxu0 %v1103
    %1822 = vmatprep.subr.mxu0 0.0
    %1823 = vmatpush1.msra.mxu0 %v1104
    %1824 = vmatprep.subr.mxu0 0.0
    %1825 = vmatpush1.msra.mxu0 0.0
    %1826 = vmatprep.subr.mxu0 0.0
    %1827 = vmatpush1.msra.mxu0 0.0
    %1828 = vmatprep.subr.mxu0 0.0
    %1829 = vmatpush1.msra.mxu0 0.0
    %1830 = vmatprep.subr.mxu0 0.0
    %1831 = vmatpush1.msra.mxu0 0.0
    %1832 = vmatprep.subr.mxu0 0.0
    %1833 = vmatpush1.msra.mxu0 0.0
    %1834 = vmatprep.subr.mxu0 0.0
    %1835 = vmatpush1.msra.mxu0 0.0
    %1836 = vmatprep.subr.mxu0 0.0
    %1837 = vmatpush1.msra.mxu0 0.0
    %1838 = vmatprep.subr.mxu0 0.0
    %1839 = vmatpush1.msra.mxu0 0.0
    %1840 = vmatprep.subr.mxu0 0.0
    %1841 = vmatpush1.msra.mxu0 0.0
    %1842 = vmatprep.subr.mxu0 0.0
    %1843 = vmatpush1.msra.mxu0 0.0
    %1844 = vmatprep.subr.mxu0 0.0
    %1845 = vmatpush1.msra.mxu0 0.0
    %1846 = vmatprep.subr.mxu0 0.0
    %1847 = vmatpush1.msra.mxu0 0.0
    %1848 = vmatprep.subr.mxu0 0.0
    %1849 = vmatpush1.msra.mxu0 0.0
    %1850 = vmatprep.subr.mxu0 0.0
    %1851 = vmatpush1.msra.mxu0 0.0
    %1852 = vmatprep.subr.mxu0 0.0
    %1853 = vmatpush1.msra.mxu0 0.0
    %1854 = vmatprep.subr.mxu0 0.0
    %1855 = vmatpush1.msra.mxu0 0.0
    %1856 = vmatprep.subr.mxu0 0.0
    %1857 = vmatpush1.msra.mxu0 0.0
    %1858 = vmatprep.subr.mxu0 0.0
    %1859 = vmatpush1.msra.mxu0 0.0
    %1860 = vmatprep.subr.mxu0 0.0
    %1861 = vmatpush1.msra.mxu0 0.0
    %1862 = vmatprep.subr.mxu0 0.0
    %1863 = vmatpush1.msra.mxu0 0.0
    %1864 = vmatprep.subr.mxu0 0.0
    %1865 = vmatpush1.msra.mxu0 0.0
    %1866 = vmatprep.subr.mxu0 0.0
    %1867 = vmatpush1.msra.mxu0 0.0
    %1868 = vmatprep.subr.mxu0 0.0
    %1869 = vmatpush1.msra.mxu0 0.0
    %1870 = vmatprep.subr.mxu0 0.0
    %1871 = vmatpush1.msra.mxu0 0.0
    %1872 = vmatprep.subr.mxu0 0.0
    %1873 = vmatpush1.msra.mxu0 0.0
    %1874 = vmatprep.subr.mxu0 0.0
    %1875 = vmatpush1.msra.mxu0 0.0
    %1876 = vmatprep.subr.mxu0 0.0
    %1877 = vmatpush1.msra.mxu0 0.0
    %1878 = vmatprep.subr.mxu0 0.0
    %1879 = vmatpush1.msra.mxu0 0.0
    %1880 = vmatprep.mubr.f32.mxu0 0.0
    %1881 = vmatmul.mubr.f32.gmra.mrb[0].mxu0 %v1738
    %v1882 = vpop.f32.mrb[0].mxu0
    %v1883 = vadd.f32 0.0, %v1882
    %v1884 = vpop.f32.mrb[0].mxu0
    %1885 = vdwg.mxu0
    %v1886 = vadd.f32 %v1098, %v1883
    %v1887 = vxor.u32 %v1886, 2147483648
    %v1888 = vmul.f32 %v1887, 1.442695
    %v1889 = vpow.pop %v1888
    %v1890 = vadd.f32 %v1889, 1.0
    %v1891 = vrcp.pop %v1890
    %v1892 = vmul.f32 1.0, %v1891
    %v1893 = vtanh.pop %v1886
    %v1894 = vmul.f32 %v1892, %v1728
    %1896 = vrot.lane.b32.xlu0 %v1893, 32
    %v1897 = vpop.permute.xlu0 %1896
    %v1899 = vmul.f32 %v1892, %v1897
    %1901 = vrot.lane.b32.xlu0 %v1899, 32
    %v1902 = vpop.permute.xlu0 %1901
    %v1904 = vadd.f32 %v1894, %v1902
    %v1905 = vtanh.pop %v1904
    %1907 = vrot.lane.b32.xlu0 %v1905, 32
    %v1908 = vpop.permute.xlu0 %1907
    %v1910 = vmul.f32 %v1892, %v1908
    %1912 = vrot.lane.b32.xlu0 %v1910, 64
    %v1913 = vpop.permute.xlu0 %1912
    %v1914 = vsel %vm171, %v1913, 0
    %1916 = vmatprep.subr.mxu0 0.0
    %1917 = vmatpush1.msra.mxu0 %v1105
    %1918 = vmatprep.subr.mxu0 0.0
    %1919 = vmatpush1.msra.mxu0 %v1106
    %1920 = vmatprep.subr.mxu0 0.0
    %1921 = vmatpush1.msra.mxu0 %v1107
    %1922 = vmatprep.subr.mxu0 0.0
    %1923 = vmatpush1.msra.mxu0 %v1108
    %1924 = vmatprep.subr.mxu0 0.0
    %1925 = vmatpush1.msra.mxu0 0.0
    %1926 = vmatprep.subr.mxu0 0.0
    %1927 = vmatpush1.msra.mxu0 0.0
    %1928 = vmatprep.subr.mxu0 0.0
    %1929 = vmatpush1.msra.mxu0 0.0
    %1930 = vmatprep.subr.mxu0 0.0
    %1931 = vmatpush1.msra.mxu0 0.0
    %1932 = vmatprep.subr.mxu0 0.0
    %1933 = vmatpush1.msra.mxu0 0.0
    %1934 = vmatprep.subr.mxu0 0.0
    %1935 = vmatpush1.msra.mxu0 0.0
    %1936 = vmatprep.subr.mxu0 0.0
    %1937 = vmatpush1.msra.mxu0 0.0
    %1938 = vmatprep.subr.mxu0 0.0
    %1939 = vmatpush1.msra.mxu0 0.0
    %1940 = vmatprep.subr.mxu0 0.0
    %1941 = vmatpush1.msra.mxu0 0.0
    %1942 = vmatprep.subr.mxu0 0.0
    %1943 = vmatpush1.msra.mxu0 0.0
    %1944 = vmatprep.subr.mxu0 0.0
    %1945 = vmatpush1.msra.mxu0 0.0
    %1946 = vmatprep.subr.mxu0 0.0
    %1947 = vmatpush1.msra.mxu0 0.0
    %1948 = vmatprep.subr.mxu0 0.0
    %1949 = vmatpush1.msra.mxu0 0.0
    %1950 = vmatprep.subr.mxu0 0.0
    %1951 = vmatpush1.msra.mxu0 0.0
    %1952 = vmatprep.subr.mxu0 0.0
    %1953 = vmatpush1.msra.mxu0 0.0
    %1954 = vmatprep.subr.mxu0 0.0
    %1955 = vmatpush1.msra.mxu0 0.0
    %1956 = vmatprep.subr.mxu0 0.0
    %1957 = vmatpush1.msra.mxu0 0.0
    %1958 = vmatprep.subr.mxu0 0.0
    %1959 = vmatpush1.msra.mxu0 0.0
    %1960 = vmatprep.subr.mxu0 0.0
    %1961 = vmatpush1.msra.mxu0 0.0
    %1962 = vmatprep.subr.mxu0 0.0
    %1963 = vmatpush1.msra.mxu0 0.0
    %1964 = vmatprep.subr.mxu0 0.0
    %1965 = vmatpush1.msra.mxu0 0.0
    %1966 = vmatprep.subr.mxu0 0.0
    %1967 = vmatpush1.msra.mxu0 0.0
    %1968 = vmatprep.subr.mxu0 0.0
    %1969 = vmatpush1.msra.mxu0 0.0
    %1970 = vmatprep.subr.mxu0 0.0
    %1971 = vmatpush1.msra.mxu0 0.0
    %1972 = vmatprep.subr.mxu0 0.0
    %1973 = vmatpush1.msra.mxu0 0.0
    %1974 = vmatprep.subr.mxu0 0.0
    %1975 = vmatpush1.msra.mxu0 0.0
    %1976 = vmatprep.subr.mxu0 0.0
    %1977 = vmatpush1.msra.mxu0 0.0
    %1978 = vmatprep.subr.mxu0 0.0
    %1979 = vmatpush1.msra.mxu0 0.0
    %1980 = vmatprep.mubr.f32.mxu0 0.0
    %1981 = vmatmul.mubr.f32.gmra.mrb[0].mxu0 %v1914
    %v1982 = vpop.f32.mrb[0].mxu0
    %v1983 = vadd.f32 %v1209, %v1982
    %v1984 = vpop.f32.mrb[0].mxu0
    %1985 = vdwg.mxu0
    %1987 = vrot.lane.b32.xlu0 %v1983, 64
    %v1988 = vpop.permute.xlu0 %1987
    %vm1990 = vcmask 648704
    %1991 = vst.msk [vmem:[#allocation8] sm:$0x3] %vm1990, %v1988
    %1992 = vmatprep.subr.mxu0 0.0
    %1993 = vmatpush1.msra.mxu0 %v1101
    %1994 = vmatprep.subr.mxu0 0.0
    %1995 = vmatpush1.msra.mxu0 %v1102
    %1996 = vmatprep.subr.mxu0 0.0
    %1997 = vmatpush1.msra.mxu0 %v1103
    %1998 = vmatprep.subr.mxu0 0.0
    %1999 = vmatpush1.msra.mxu0 %v1104
    %2000 = vmatprep.subr.mxu0 0.0
    %2001 = vmatpush1.msra.mxu0 0.0
    %2002 = vmatprep.subr.mxu0 0.0
    %2003 = vmatpush1.msra.mxu0 0.0
    %2004 = vmatprep.subr.mxu0 0.0
    %2005 = vmatpush1.msra.mxu0 0.0
    %2006 = vmatprep.subr.mxu0 0.0
    %2007 = vmatpush1.msra.mxu0 0.0
    %2008 = vmatprep.subr.mxu0 0.0
    %2009 = vmatpush1.msra.mxu0 0.0
    %2010 = vmatprep.subr.mxu0 0.0
    %2011 = vmatpush1.msra.mxu0 0.0
    %2012 = vmatprep.subr.mxu0 0.0
    %2013 = vmatpush1.msra.mxu0 0.0
    %2014 = vmatprep.subr.mxu0 0.0
    %2015 = vmatpush1.msra.mxu0 0.0
    %2016 = vmatprep.subr.mxu0 0.0
    %2017 = vmatpush1.msra.mxu0 0.0
    %2018 = vmatprep.subr.mxu0 0.0
    %2019 = vmatpush1.msra.mxu0 0.0
    %2020 = vmatprep.subr.mxu0 0.0
    %2021 = vmatpush1.msra.mxu0 0.0
    %2022 = vmatprep.subr.mxu0 0.0
    %2023 = vmatpush1.msra.mxu0 0.0
    %2024 = vmatprep.subr.mxu0 0.0
    %2025 = vmatpush1.msra.mxu0 0.0
    %2026 = vmatprep.subr.mxu0 0.0
    %2027 = vmatpush1.msra.mxu0 0.0
    %2028 = vmatprep.subr.mxu0 0.0
    %2029 = vmatpush1.msra.mxu0 0.0
    %2030 = vmatprep.subr.mxu0 0.0
    %2031 = vmatpush1.msra.mxu0 0.0
    %2032 = vmatprep.subr.mxu0 0.0
    %2033 = vmatpush1.msra.mxu0 0.0
    %2034 = vmatprep.subr.mxu0 0.0
    %2035 = vmatpush1.msra.mxu0 0.0
    %2036 = vmatprep.subr.mxu0 0.0
    %2037 = vmatpush1.msra.mxu0 0.0
    %2038 = vmatprep.subr.mxu0 0.0
    %2039 = vmatpush1.msra.mxu0 0.0
    %2040 = vmatprep.subr.mxu0 0.0
    %2041 = vmatpush1.msra.mxu0 0.0
    %2042 = vmatprep.subr.mxu0 0.0
    %2043 = vmatpush1.msra.mxu0 0.0
    %2044 = vmatprep.subr.mxu0 0.0
    %2045 = vmatpush1.msra.mxu0 0.0
    %2046 = vmatprep.subr.mxu0 0.0
    %2047 = vmatpush1.msra.mxu0 0.0
    %2048 = vmatprep.subr.mxu0 0.0
    %2049 = vmatpush1.msra.mxu0 0.0
    %2050 = vmatprep.subr.mxu0 0.0
    %2051 = vmatpush1.msra.mxu0 0.0
    %2052 = vmatprep.subr.mxu0 0.0
    %2053 = vmatpush1.msra.mxu0 0.0
    %2054 = vmatprep.subr.mxu0 0.0
    %2055 = vmatpush1.msra.mxu0 0.0
    %2056 = vmatprep.mubr.f32.mxu0 0.0
    %2057 = vmatmul.mubr.f32.gmra.mrb[0].mxu0 %v1914
    %v2058 = vpop.f32.mrb[0].mxu0
    %v2059 = vadd.f32 0.0, %v2058
    %v2060 = vpop.f32.mrb[0].mxu0
    %2061 = vdwg.mxu0
    %v2062 = vadd.f32 %v1098, %v2059
    %v2063 = vxor.u32 %v2062, 2147483648
    %v2064 = vmul.f32 %v2063, 1.442695
    %v2065 = vpow.pop %v2064
    %v2066 = vadd.f32 %v2065, 1.0
    %v2067 = vrcp.pop %v2066
    %v2068 = vmul.f32 1.0, %v2067
    %v2069 = vtanh.pop %v2062
    %v2070 = vmul.f32 %v2068, %v1904
    %2072 = vrot.lane.b32.xlu0 %v2069, 32
    %v2073 = vpop.permute.xlu0 %2072
    %v2075 = vmul.f32 %v2068, %v2073
    %2077 = vrot.lane.b32.xlu0 %v2075, 32
    %v2078 = vpop.permute.xlu0 %2077
    %v2080 = vadd.f32 %v2070, %v2078
    %v2081 = vtanh.pop %v2080
    %2083 = vrot.lane.b32.xlu0 %v2081, 32
    %v2084 = vpop.permute.xlu0 %2083
    %v2086 = vmul.f32 %v2068, %v2084
    %2088 = vrot.lane.b32.xlu0 %v2086, 64
    %v2089 = vpop.permute.xlu0 %2088
    %v2090 = vsel %vm171, %v2089, 0
    %2092 = vmatprep.subr.mxu0 0.0
    %2093 = vmatpush1.msra.mxu0 %v1105
    %2094 = vmatprep.subr.mxu0 0.0
    %2095 = vmatpush1.msra.mxu0 %v1106
    %2096 = vmatprep.subr.mxu0 0.0
    %2097 = vmatpush1.msra.mxu0 %v1107
    %2098 = vmatprep.subr.mxu0 0.0
    %2099 = vmatpush1.msra.mxu0 %v1108
    %2100 = vmatprep.subr.mxu0 0.0
    %2101 = vmatpush1.msra.mxu0 0.0
    %2102 = vmatprep.subr.mxu0 0.0
    %2103 = vmatpush1.msra.mxu0 0.0
    %2104 = vmatprep.subr.mxu0 0.0
    %2105 = vmatpush1.msra.mxu0 0.0
    %2106 = vmatprep.subr.mxu0 0.0
    %2107 = vmatpush1.msra.mxu0 0.0
    %2108 = vmatprep.subr.mxu0 0.0
    %2109 = vmatpush1.msra.mxu0 0.0
    %2110 = vmatprep.subr.mxu0 0.0
    %2111 = vmatpush1.msra.mxu0 0.0
    %2112 = vmatprep.subr.mxu0 0.0
    %2113 = vmatpush1.msra.mxu0 0.0
    %2114 = vmatprep.subr.mxu0 0.0
    %2115 = vmatpush1.msra.mxu0 0.0
    %2116 = vmatprep.subr.mxu0 0.0
    %2117 = vmatpush1.msra.mxu0 0.0
    %2118 = vmatprep.subr.mxu0 0.0
    %2119 = vmatpush1.msra.mxu0 0.0
    %2120 = vmatprep.subr.mxu0 0.0
    %2121 = vmatpush1.msra.mxu0 0.0
    %2122 = vmatprep.subr.mxu0 0.0
    %2123 = vmatpush1.msra.mxu0 0.0
    %2124 = vmatprep.subr.mxu0 0.0
    %2125 = vmatpush1.msra.mxu0 0.0
    %2126 = vmatprep.subr.mxu0 0.0
    %2127 = vmatpush1.msra.mxu0 0.0
    %2128 = vmatprep.subr.mxu0 0.0
    %2129 = vmatpush1.msra.mxu0 0.0
    %2130 = vmatprep.subr.mxu0 0.0
    %2131 = vmatpush1.msra.mxu0 0.0
    %2132 = vmatprep.subr.mxu0 0.0
    %2133 = vmatpush1.msra.mxu0 0.0
    %2134 = vmatprep.subr.mxu0 0.0
    %2135 = vmatpush1.msra.mxu0 0.0
    %2136 = vmatprep.subr.mxu0 0.0
    %2137 = vmatpush1.msra.mxu0 0.0
    %2138 = vmatprep.subr.mxu0 0.0
    %2139 = vmatpush1.msra.mxu0 0.0
    %2140 = vmatprep.subr.mxu0 0.0
    %2141 = vmatpush1.msra.mxu0 0.0
    %2142 = vmatprep.subr.mxu0 0.0
    %2143 = vmatpush1.msra.mxu0 0.0
    %2144 = vmatprep.subr.mxu0 0.0
    %2145 = vmatpush1.msra.mxu0 0.0
    %2146 = vmatprep.subr.mxu0 0.0
    %2147 = vmatpush1.msra.mxu0 0.0
    %2148 = vmatprep.subr.mxu0 0.0
    %2149 = vmatpush1.msra.mxu0 0.0
    %2150 = vmatprep.subr.mxu0 0.0
    %2151 = vmatpush1.msra.mxu0 0.0
    %2152 = vmatprep.subr.mxu0 0.0
    %2153 = vmatpush1.msra.mxu0 0.0
    %2154 = vmatprep.subr.mxu0 0.0
    %2155 = vmatpush1.msra.mxu0 0.0
    %2156 = vmatprep.mubr.f32.mxu0 0.0
    %2157 = vmatmul.mubr.f32.gmra.mrb[0].mxu0 %v2090
    %v2158 = vpop.f32.mrb[0].mxu0
    %v2159 = vadd.f32 %v1209, %v2158
    %v2160 = vpop.f32.mrb[0].mxu0
    %2161 = vdwg.mxu0
    %2163 = vrot.lane.b32.xlu0 %v2159, 80
    %v2164 = vpop.permute.xlu0 %2163
    %vm2166 = vcmask 779904
    %2167 = vst.msk [vmem:[#allocation8] sm:$0x3] %vm2166, %v2164
    %2168 = vmatprep.subr.mxu0 0.0
    %2169 = vmatpush1.msra.mxu0 %v1101
    %2170 = vmatprep.subr.mxu0 0.0
    %2171 = vmatpush1.msra.mxu0 %v1102
    %2172 = vmatprep.subr.mxu0 0.0
    %2173 = vmatpush1.msra.mxu0 %v1103
    %2174 = vmatprep.subr.mxu0 0.0
    %2175 = vmatpush1.msra.mxu0 %v1104
    %2176 = vmatprep.subr.mxu0 0.0
    %2177 = vmatpush1.msra.mxu0 0.0
    %2178 = vmatprep.subr.mxu0 0.0
    %2179 = vmatpush1.msra.mxu0 0.0
    %2180 = vmatprep.subr.mxu0 0.0
    %2181 = vmatpush1.msra.mxu0 0.0
    %2182 = vmatprep.subr.mxu0 0.0
    %2183 = vmatpush1.msra.mxu0 0.0
    %2184 = vmatprep.subr.mxu0 0.0
    %2185 = vmatpush1.msra.mxu0 0.0
    %2186 = vmatprep.subr.mxu0 0.0
    %2187 = vmatpush1.msra.mxu0 0.0
    %2188 = vmatprep.subr.mxu0 0.0
    %2189 = vmatpush1.msra.mxu0 0.0
    %2190 = vmatprep.subr.mxu0 0.0
    %2191 = vmatpush1.msra.mxu0 0.0
    %2192 = vmatprep.subr.mxu0 0.0
    %2193 = vmatpush1.msra.mxu0 0.0
    %2194 = vmatprep.subr.mxu0 0.0
    %2195 = vmatpush1.msra.mxu0 0.0
    %2196 = vmatprep.subr.mxu0 0.0
    %2197 = vmatpush1.msra.mxu0 0.0
    %2198 = vmatprep.subr.mxu0 0.0
    %2199 = vmatpush1.msra.mxu0 0.0
    %2200 = vmatprep.subr.mxu0 0.0
    %2201 = vmatpush1.msra.mxu0 0.0
    %2202 = vmatprep.subr.mxu0 0.0
    %2203 = vmatpush1.msra.mxu0 0.0
    %2204 = vmatprep.subr.mxu0 0.0
    %2205 = vmatpush1.msra.mxu0 0.0
    %2206 = vmatprep.subr.mxu0 0.0
    %2207 = vmatpush1.msra.mxu0 0.0
    %2208 = vmatprep.subr.mxu0 0.0
    %2209 = vmatpush1.msra.mxu0 0.0
    %2210 = vmatprep.subr.mxu0 0.0
    %2211 = vmatpush1.msra.mxu0 0.0
    %2212 = vmatprep.subr.mxu0 0.0
    %2213 = vmatpush1.msra.mxu0 0.0
    %2214 = vmatprep.subr.mxu0 0.0
    %2215 = vmatpush1.msra.mxu0 0.0
    %2216 = vmatprep.subr.mxu0 0.0
    %2217 = vmatpush1.msra.mxu0 0.0
    %2218 = vmatprep.subr.mxu0 0.0
    %2219 = vmatpush1.msra.mxu0 0.0
    %2220 = vmatprep.subr.mxu0 0.0
    %2221 = vmatpush1.msra.mxu0 0.0
    %2222 = vmatprep.subr.mxu0 0.0
    %2223 = vmatpush1.msra.mxu0 0.0
    %2224 = vmatprep.subr.mxu0 0.0
    %2225 = vmatpush1.msra.mxu0 0.0
    %2226 = vmatprep.subr.mxu0 0.0
    %2227 = vmatpush1.msra.mxu0 0.0
    %2228 = vmatprep.subr.mxu0 0.0
    %2229 = vmatpush1.msra.mxu0 0.0
    %2230 = vmatprep.subr.mxu0 0.0
    %2231 = vmatpush1.msra.mxu0 0.0
    %2232 = vmatprep.mubr.f32.mxu0 0.0
    %2233 = vmatmul.mubr.f32.gmra.mrb[0].mxu0 %v2090
    %v2234 = vpop.f32.mrb[0].mxu0
    %v2235 = vadd.f32 0.0, %v2234
    %v2236 = vpop.f32.mrb[0].mxu0
    %2237 = vdwg.mxu0
    %v2238 = vadd.f32 %v1098, %v2235
    %v2239 = vxor.u32 %v2238, 2147483648
    %v2240 = vmul.f32 %v2239, 1.442695
    %v2241 = vpow.pop %v2240
    %v2242 = vadd.f32 %v2241, 1.0
    %v2243 = vrcp.pop %v2242
    %v2244 = vmul.f32 1.0, %v2243
    %v2245 = vtanh.pop %v2238
    %v2246 = vmul.f32 %v2244, %v2080
    %2248 = vrot.lane.b32.xlu0 %v2245, 32
    %v2249 = vpop.permute.xlu0 %2248
    %v2251 = vmul.f32 %v2244, %v2249
    %2253 = vrot.lane.b32.xlu0 %v2251, 32
    %v2254 = vpop.permute.xlu0 %2253
    %v2256 = vadd.f32 %v2246, %v2254
    %v2257 = vtanh.pop %v2256
    %2259 = vrot.lane.b32.xlu0 %v2257, 32
    %v2260 = vpop.permute.xlu0 %2259
    %v2262 = vmul.f32 %v2244, %v2260
    %2264 = vrot.lane.b32.xlu0 %v2262, 64
    %v2265 = vpop.permute.xlu0 %2264
    %v2266 = vsel %vm171, %v2265, 0
    %2268 = vmatprep.subr.mxu0 0.0
    %2269 = vmatpush1.msra.mxu0 %v1105
    %2270 = vmatprep.subr.mxu0 0.0
    %2271 = vmatpush1.msra.mxu0 %v1106
    %2272 = vmatprep.subr.mxu0 0.0
    %2273 = vmatpush1.msra.mxu0 %v1107
    %2274 = vmatprep.subr.mxu0 0.0
    %2275 = vmatpush1.msra.mxu0 %v1108
    %2276 = vmatprep.subr.mxu0 0.0
    %2277 = vmatpush1.msra.mxu0 0.0
    %2278 = vmatprep.subr.mxu0 0.0
    %2279 = vmatpush1.msra.mxu0 0.0
    %2280 = vmatprep.subr.mxu0 0.0
    %2281 = vmatpush1.msra.mxu0 0.0
    %2282 = vmatprep.subr.mxu0 0.0
    %2283 = vmatpush1.msra.mxu0 0.0
    %2284 = vmatprep.subr.mxu0 0.0
    %2285 = vmatpush1.msra.mxu0 0.0
    %2286 = vmatprep.subr.mxu0 0.0
    %2287 = vmatpush1.msra.mxu0 0.0
    %2288 = vmatprep.subr.mxu0 0.0
    %2289 = vmatpush1.msra.mxu0 0.0
    %2290 = vmatprep.subr.mxu0 0.0
    %2291 = vmatpush1.msra.mxu0 0.0
    %2292 = vmatprep.subr.mxu0 0.0
    %2293 = vmatpush1.msra.mxu0 0.0
    %2294 = vmatprep.subr.mxu0 0.0
    %2295 = vmatpush1.msra.mxu0 0.0
    %2296 = vmatprep.subr.mxu0 0.0
    %2297 = vmatpush1.msra.mxu0 0.0
    %2298 = vmatprep.subr.mxu0 0.0
    %2299 = vmatpush1.msra.mxu0 0.0
    %2300 = vmatprep.subr.mxu0 0.0
    %2301 = vmatpush1.msra.mxu0 0.0
    %2302 = vmatprep.subr.mxu0 0.0
    %2303 = vmatpush1.msra.mxu0 0.0
    %2304 = vmatprep.subr.mxu0 0.0
    %2305 = vmatpush1.msra.mxu0 0.0
    %2306 = vmatprep.subr.mxu0 0.0
    %2307 = vmatpush1.msra.mxu0 0.0
    %2308 = vmatprep.subr.mxu0 0.0
    %2309 = vmatpush1.msra.mxu0 0.0
    %2310 = vmatprep.subr.mxu0 0.0
    %2311 = vmatpush1.msra.mxu0 0.0
    %2312 = vmatprep.subr.mxu0 0.0
    %2313 = vmatpush1.msra.mxu0 0.0
    %2314 = vmatprep.subr.mxu0 0.0
    %2315 = vmatpush1.msra.mxu0 0.0
    %2316 = vmatprep.subr.mxu0 0.0
    %2317 = vmatpush1.msra.mxu0 0.0
    %2318 = vmatprep.subr.mxu0 0.0
    %2319 = vmatpush1.msra.mxu0 0.0
    %2320 = vmatprep.subr.mxu0 0.0
    %2321 = vmatpush1.msra.mxu0 0.0
    %2322 = vmatprep.subr.mxu0 0.0
    %2323 = vmatpush1.msra.mxu0 0.0
    %2324 = vmatprep.subr.mxu0 0.0
    %2325 = vmatpush1.msra.mxu0 0.0
    %2326 = vmatprep.subr.mxu0 0.0
    %2327 = vmatpush1.msra.mxu0 0.0
    %2328 = vmatprep.subr.mxu0 0.0
    %2329 = vmatpush1.msra.mxu0 0.0
    %2330 = vmatprep.subr.mxu0 0.0
    %2331 = vmatpush1.msra.mxu0 0.0
    %2332 = vmatprep.mubr.f32.mxu0 0.0
    %2333 = vmatmul.mubr.f32.gmra.mrb[0].mxu0 %v2266
    %v2334 = vpop.f32.mrb[0].mxu0
    %v2335 = vadd.f32 %v1209, %v2334
    %v2336 = vpop.f32.mrb[0].mxu0
    %2337 = vdwg.mxu0
    %2339 = vrot.lane.b32.xlu0 %v2335, 96
    %v2340 = vpop.permute.xlu0 %2339
    %vm2342 = vcmask 911104
    %2343 = vst.msk [vmem:[#allocation8] sm:$0x3] %vm2342, %v2340
    %2344 = vmatprep.subr.mxu0 0.0
    %2345 = vmatpush1.msra.mxu0 %v1101
    %2346 = vmatprep.subr.mxu0 0.0
    %2347 = vmatpush1.msra.mxu0 %v1102
    %2348 = vmatprep.subr.mxu0 0.0
    %2349 = vmatpush1.msra.mxu0 %v1103
    %2350 = vmatprep.subr.mxu0 0.0
    %2351 = vmatpush1.msra.mxu0 %v1104
    %2352 = vmatprep.subr.mxu0 0.0
    %2353 = vmatpush1.msra.mxu0 0.0
    %2354 = vmatprep.subr.mxu0 0.0
    %2355 = vmatpush1.msra.mxu0 0.0
    %2356 = vmatprep.subr.mxu0 0.0
    %2357 = vmatpush1.msra.mxu0 0.0
    %2358 = vmatprep.subr.mxu0 0.0
    %2359 = vmatpush1.msra.mxu0 0.0
    %2360 = vmatprep.subr.mxu0 0.0
    %2361 = vmatpush1.msra.mxu0 0.0
    %2362 = vmatprep.subr.mxu0 0.0
    %2363 = vmatpush1.msra.mxu0 0.0
    %2364 = vmatprep.subr.mxu0 0.0
    %2365 = vmatpush1.msra.mxu0 0.0
    %2366 = vmatprep.subr.mxu0 0.0
    %2367 = vmatpush1.msra.mxu0 0.0
    %2368 = vmatprep.subr.mxu0 0.0
    %2369 = vmatpush1.msra.mxu0 0.0
    %2370 = vmatprep.subr.mxu0 0.0
    %2371 = vmatpush1.msra.mxu0 0.0
    %2372 = vmatprep.subr.mxu0 0.0
    %2373 = vmatpush1.msra.mxu0 0.0
    %2374 = vmatprep.subr.mxu0 0.0
    %2375 = vmatpush1.msra.mxu0 0.0
    %2376 = vmatprep.subr.mxu0 0.0
    %2377 = vmatpush1.msra.mxu0 0.0
    %2378 = vmatprep.subr.mxu0 0.0
    %2379 = vmatpush1.msra.mxu0 0.0
    %2380 = vmatprep.subr.mxu0 0.0
    %2381 = vmatpush1.msra.mxu0 0.0
    %2382 = vmatprep.subr.mxu0 0.0
    %2383 = vmatpush1.msra.mxu0 0.0
    %2384 = vmatprep.subr.mxu0 0.0
    %2385 = vmatpush1.msra.mxu0 0.0
    %2386 = vmatprep.subr.mxu0 0.0
    %2387 = vmatpush1.msra.mxu0 0.0
    %2388 = vmatprep.subr.mxu0 0.0
    %2389 = vmatpush1.msra.mxu0 0.0
    %2390 = vmatprep.subr.mxu0 0.0
    %2391 = vmatpush1.msra.mxu0 0.0
    %2392 = vmatprep.subr.mxu0 0.0
    %2393 = vmatpush1.msra.mxu0 0.0
    %2394 = vmatprep.subr.mxu0 0.0
    %2395 = vmatpush1.msra.mxu0 0.0
    %2396 = vmatprep.subr.mxu0 0.0
    %2397 = vmatpush1.msra.mxu0 0.0
    %2398 = vmatprep.subr.mxu0 0.0
    %2399 = vmatpush1.msra.mxu0 0.0
    %2400 = vmatprep.subr.mxu0 0.0
    %2401 = vmatpush1.msra.mxu0 0.0
    %2402 = vmatprep.subr.mxu0 0.0
    %2403 = vmatpush1.msra.mxu0 0.0
    %2404 = vmatprep.subr.mxu0 0.0
    %2405 = vmatpush1.msra.mxu0 0.0
    %2406 = vmatprep.subr.mxu0 0.0
    %2407 = vmatpush1.msra.mxu0 0.0
    %2408 = vmatprep.mubr.f32.mxu0 0.0
    %2409 = vmatmul.mubr.f32.gmra.mrb[0].mxu0 %v2266
    %v2410 = vpop.f32.mrb[0].mxu0
    %v2411 = vadd.f32 0.0, %v2410
    %v2412 = vpop.f32.mrb[0].mxu0
    %2413 = vdwg.mxu0
    %v2414 = vadd.f32 %v1098, %v2411
    %v2415 = vxor.u32 %v2414, 2147483648
    %v2416 = vmul.f32 %v2415, 1.442695
    %v2417 = vpow.pop %v2416
    %v2418 = vadd.f32 %v2417, 1.0
    %v2419 = vrcp.pop %v2418
    %v2420 = vmul.f32 1.0, %v2419
    %v2421 = vtanh.pop %v2414
    %v2422 = vmul.f32 %v2420, %v2256
    %2424 = vrot.lane.b32.xlu0 %v2421, 32
    %v2425 = vpop.permute.xlu0 %2424
    %v2427 = vmul.f32 %v2420, %v2425
    %2429 = vrot.lane.b32.xlu0 %v2427, 32
    %v2430 = vpop.permute.xlu0 %2429
    %v2432 = vadd.f32 %v2422, %v2430
    %v2433 = vtanh.pop %v2432
    %2435 = vrot.lane.b32.xlu0 %v2433, 32
    %v2436 = vpop.permute.xlu0 %2435
    %v2438 = vmul.f32 %v2420, %v2436
    %2440 = vrot.lane.b32.xlu0 %v2438, 64
    %v2441 = vpop.permute.xlu0 %2440
    %v2442 = vsel %vm171, %v2441, 0
    %2444 = vmatprep.subr.mxu0 0.0
    %2445 = vmatpush1.msra.mxu0 %v1105
    %2446 = vmatprep.subr.mxu0 0.0
    %2447 = vmatpush1.msra.mxu0 %v1106
    %2448 = vmatprep.subr.mxu0 0.0
    %2449 = vmatpush1.msra.mxu0 %v1107
    %2450 = vmatprep.subr.mxu0 0.0
    %2451 = vmatpush1.msra.mxu0 %v1108
    %2452 = vmatprep.subr.mxu0 0.0
    %2453 = vmatpush1.msra.mxu0 0.0
    %2454 = vmatprep.subr.mxu0 0.0
    %2455 = vmatpush1.msra.mxu0 0.0
    %2456 = vmatprep.subr.mxu0 0.0
    %2457 = vmatpush1.msra.mxu0 0.0
    %2458 = vmatprep.subr.mxu0 0.0
    %2459 = vmatpush1.msra.mxu0 0.0
    %2460 = vmatprep.subr.mxu0 0.0
    %2461 = vmatpush1.msra.mxu0 0.0
    %2462 = vmatprep.subr.mxu0 0.0
    %2463 = vmatpush1.msra.mxu0 0.0
    %2464 = vmatprep.subr.mxu0 0.0
    %2465 = vmatpush1.msra.mxu0 0.0
    %2466 = vmatprep.subr.mxu0 0.0
    %2467 = vmatpush1.msra.mxu0 0.0
    %2468 = vmatprep.subr.mxu0 0.0
    %2469 = vmatpush1.msra.mxu0 0.0
    %2470 = vmatprep.subr.mxu0 0.0
    %2471 = vmatpush1.msra.mxu0 0.0
    %2472 = vmatprep.subr.mxu0 0.0
    %2473 = vmatpush1.msra.mxu0 0.0
    %2474 = vmatprep.subr.mxu0 0.0
    %2475 = vmatpush1.msra.mxu0 0.0
    %2476 = vmatprep.subr.mxu0 0.0
    %2477 = vmatpush1.msra.mxu0 0.0
    %2478 = vmatprep.subr.mxu0 0.0
    %2479 = vmatpush1.msra.mxu0 0.0
    %2480 = vmatprep.subr.mxu0 0.0
    %2481 = vmatpush1.msra.mxu0 0.0
    %2482 = vmatprep.subr.mxu0 0.0
    %2483 = vmatpush1.msra.mxu0 0.0
    %2484 = vmatprep.subr.mxu0 0.0
    %2485 = vmatpush1.msra.mxu0 0.0
    %2486 = vmatprep.subr.mxu0 0.0
    %2487 = vmatpush1.msra.mxu0 0.0
    %2488 = vmatprep.subr.mxu0 0.0
    %2489 = vmatpush1.msra.mxu0 0.0
    %2490 = vmatprep.subr.mxu0 0.0
    %2491 = vmatpush1.msra.mxu0 0.0
    %2492 = vmatprep.subr.mxu0 0.0
    %2493 = vmatpush1.msra.mxu0 0.0
    %2494 = vmatprep.subr.mxu0 0.0
    %2495 = vmatpush1.msra.mxu0 0.0
    %2496 = vmatprep.subr.mxu0 0.0
    %2497 = vmatpush1.msra.mxu0 0.0
    %2498 = vmatprep.subr.mxu0 0.0
    %2499 = vmatpush1.msra.mxu0 0.0
    %2500 = vmatprep.subr.mxu0 0.0
    %2501 = vmatpush1.msra.mxu0 0.0
    %2502 = vmatprep.subr.mxu0 0.0
    %2503 = vmatpush1.msra.mxu0 0.0
    %2504 = vmatprep.subr.mxu0 0.0
    %2505 = vmatpush1.msra.mxu0 0.0
    %2506 = vmatprep.subr.mxu0 0.0
    %2507 = vmatpush1.msra.mxu0 0.0
    %2508 = vmatprep.mubr.f32.mxu0 0.0
    %2509 = vmatmul.mubr.f32.gmra.mrb[0].mxu0 %v2442
    %v2510 = vpop.f32.mrb[0].mxu0
    %v2511 = vadd.f32 %v1209, %v2510
    %v2512 = vpop.f32.mrb[0].mxu0
    %2513 = vdwg.mxu0
    %2515 = vrot.lane.b32.xlu0 %v2511, 112
    %v2516 = vpop.permute.xlu0 %2515
    %vm2518 = vcmask 1042304
    %2519 = vst.msk [vmem:[#allocation8] sm:$0x3] %vm2518, %v2516
    // Predicated region
    $region50: #{tpu_custom_call.1} parent=1 // pred_check
      _
    $region51: #{tpu_custom_call.1} parent=1 // pred_check_branch
      %2521 = sbr.rel (0) target = $region53
    $region52: #{tpu_custom_call.1} parent=1 // pred_region
      %s2523 = ssub.s32 32, 32
      %2524 = vsyncadd [#allocation4], %s2523
      %s2526 = sshll.u32 [#allocation8], 4
      %s2527 = int_to_ptr.vmem [resolvable:$true] %s2526
      %2529 = dma.vmem_to_hbm [thread:$0]  %s2527, 32, %s9, [#allocation4]
    $region53: #{tpu_custom_call.1} parent=1 // pred_fallthru
      _
    // Predicated region
    $region54: #{tpu_custom_call.1} parent=1 // pred_check
      _
    $region55: #{tpu_custom_call.1} parent=1 // pred_check_branch
      %2531 = sbr.rel (0) target = $region57
    $region56: #{tpu_custom_call.1} parent=1 // pred_region
      %2532 = dma.done [#allocation4], 32
    $region57: #{tpu_custom_call.1} parent=1 // pred_fallthru
      _
    %2533 = vsyncpa [#allocation3], 1
    %2534 = vsyncpa [#allocation6], 1
    %2535 = vsyncpa [#allocation4], 1

</llo_original>
